<compile_context>
chip_gen: v7x
topology: tpu7x:2x2x1
jax: 0.10.0
libtpu: 0.0.40
codegen_flags: <defaults>
</compile_context>

<pallas_src>
import functools
import math

import jax
import jax.numpy as jnp
from jax.experimental import pallas as pl
from jax.experimental.pallas import tpu as pltpu


def _layernorm(x, gamma, beta, eps):
    # Matches the custom PyTorch LayerNorm: mean over last dim, *unbiased* std
    # (divide by N-1), (x - mean) / (std + eps), then affine.
    n = x.shape[-1]
    mean = jnp.mean(x, axis=-1, keepdims=True)
    diff = x - mean
    var = jnp.sum(diff * diff, axis=-1, keepdims=True) * (1.0 / (n - 1))
    inv = pl.reciprocal(jnp.sqrt(var) + eps, approx=True)
    return gamma * (diff * inv) + beta


def transformer_block_kernel(
    x_ref,
    g1_ref, b1_ref,
    wq_ref, wk_ref, wv_ref, wp_ref, bp_ref,
    g2_ref, b2_ref,
    w1_ref, bb1_ref, w2_ref, bb2_ref,
    out_ref,
    *, n_heads, head_size, seq_len, eps, sm_scale):
    T = seq_len
    M, E = x_ref.shape                  # M = batch_block * T
    bb = M // T
    H = n_heads * head_size

    x = x_ref[...]                      # (M, E) f32

    # ---- norm1 (f32 elementwise) ----
    x1 = _layernorm(x, g1_ref[...], b1_ref[...], eps)

    # ---- multi-head causal self-attention ----
    x1_bf = x1.astype(jnp.bfloat16)
    q = jnp.dot(x1_bf, wq_ref[...], preferred_element_type=jnp.float32)
    k = jnp.dot(x1_bf, wk_ref[...], preferred_element_type=jnp.float32)
    v = jnp.dot(x1_bf, wv_ref[...], preferred_element_type=jnp.float32)
    qb = q.reshape(bb, T, H).astype(jnp.bfloat16)
    kb = k.reshape(bb, T, H).astype(jnp.bfloat16)
    vb = v.reshape(bb, T, H).astype(jnp.bfloat16)

    # Causal mask: grid-invariant, built once per kernel invocation.
    row = jax.lax.broadcasted_iota(jnp.int32, (T, T), 0)
    col = jax.lax.broadcasted_iota(jnp.int32, (T, T), 1)
    causal = (row >= col)[None]         # (1, T, T): keep the lower triangle
    neg_big = jnp.float32(-1e30)        # finite fill; exp underflows to exactly 0

    attn = jnp.zeros((M, E), jnp.float32)
    for h in range(n_heads):            # static & small; each einsum is B-batched
        sl = slice(h * head_size, (h + 1) * head_size)
        qh, kh, vh = qb[:, :, sl], kb[:, :, sl], vb[:, :, sl]
        s = jnp.einsum('btd,bsd->bts', qh, kh,
                       preferred_element_type=jnp.float32) * sm_scale
        s = jnp.where(causal, s, neg_big)
        s = s - jnp.max(s, axis=-1, keepdims=True)
        e = jnp.exp(s)                  # f32 softmax (EUP)
        p = e * pl.reciprocal(jnp.sum(e, axis=-1, keepdims=True), approx=True)
        oh = jnp.einsum('bts,bsd->btd', p.astype(jnp.bfloat16), vh,
                        preferred_element_type=jnp.float32)
        # Fold this head's slice of the output projection; avoids a lane-concat.
        attn = attn + jnp.dot(oh.reshape(M, head_size).astype(jnp.bfloat16),
                              wp_ref[sl, :], preferred_element_type=jnp.float32)
    attn = attn + bp_ref[...]
    x2 = attn + x1                      # residual adds the normed input (per module)

    # ---- norm2 ----
    x3 = _layernorm(x2, g2_ref[...], b2_ref[...], eps)

    # ---- feed-forward (bf16 matmuls, f32 elementwise) ----
    h1 = jnp.dot(x3.astype(jnp.bfloat16), w1_ref[...],
                 preferred_element_type=jnp.float32) + bb1_ref[...]
    h1 = jnp.maximum(h1, 0.0)
    ff = jnp.dot(h1.astype(jnp.bfloat16), w2_ref[...],
                 preferred_element_type=jnp.float32) + bb2_ref[...]

    out_ref[...] = (ff + x3).astype(out_ref.dtype)   # residual adds norm2 output


def transformer_block(x, params, *, n_heads, head_size, eps=1e-6, batch_block=None):
    B, T, E = x.shape
    if batch_block is None:
        batch_block = B                 # fold the whole batch into one grid step
    assert B % batch_block == 0, (B, batch_block)
    grid = (B // batch_block,)

    # Present activations as a 2-D (B*T, E) slab: every GEMM inside the kernel
    # gets M = batch_block*T rows and no in-kernel batch reshape is needed.
    x2d = x.reshape(B * T, E)

    param_names = ["g1", "b1", "wq", "wk", "wv", "wp", "bp",
                   "g2", "b2", "w1", "bb1", "w2", "bb2"]

    def full_spec(shape):
        n = len(shape)
        return pl.BlockSpec(shape, lambda b, _n=n: (0,) * _n)

    in_specs = [pl.BlockSpec((batch_block * T, E), lambda b: (b, 0))]
    args = [x2d]
    for name in param_names:
        p = params[name]
        in_specs.append(full_spec(p.shape))
        args.append(p)

    kernel = functools.partial(
        transformer_block_kernel,
        n_heads=n_heads, head_size=head_size, seq_len=T, eps=eps,
        sm_scale=1.0 / math.sqrt(head_size))

    out2d = pl.pallas_call(
        kernel,
        out_shape=jax.ShapeDtypeStruct((B * T, E), x.dtype),
        grid=grid,
        in_specs=in_specs,
        out_specs=pl.BlockSpec((batch_block * T, E), lambda b: (b, 0)),
        compiler_params=pltpu.CompilerParams(
            dimension_semantics=("parallel",)),
    )(*args)
    return out2d.reshape(B, T, E)


def init_params(key, embed_size, n_heads, head_size, ff_hidden_size):
    ks = jax.random.split(key, 8)
    scale = 0.02
    H = n_heads * head_size

    def w(k, shape):
        # Matmul weights live in bf16 (MXU-native rate, half the DMA bytes).
        return (scale * jax.random.normal(k, shape, jnp.float32)).astype(jnp.bfloat16)

    return {
        # LayerNorm 1 (f32: only touched on the VPU/EUP path)
        "g1": jnp.ones((1, embed_size), jnp.float32),
        "b1": jnp.zeros((1, embed_size), jnp.float32),
        # Attention: per-head q/k/v weights stacked along the output dim.
        "wq": w(ks[0], (embed_size, H)),
        "wk": w(ks[1], (embed_size, H)),
        "wv": w(ks[2], (embed_size, H)),
        "wp": w(ks[3], (H, embed_size)),
        "bp": scale * jax.random.normal(ks[4], (1, embed_size), jnp.float32),
        # LayerNorm 2
        "g2": jnp.ones((1, embed_size), jnp.float32),
        "b2": jnp.zeros((1, embed_size), jnp.float32),
        # FeedForward
        "w1": w(ks[5], (embed_size, ff_hidden_size)),
        "bb1": scale * jax.random.normal(ks[6], (1, ff_hidden_size), jnp.float32),
        "w2": w(ks[7], (ff_hidden_size, embed_size)),
        "bb2": jnp.zeros((1, embed_size), jnp.float32),
    }


if __name__ == "__main__":
    # Shapes consistent with TransformerBlock(max_context_size=16, embed_size=32,
    # n_heads=4, head_size=None -> 8, ff_hidden_size=None -> 128).
    B, T, E = 2, 8, 32
    n_heads = 4
    head_size = E // n_heads          # head_size=None path
    ff_hidden = 4 * E                 # ff_hidden_size=None path

    key = jax.random.PRNGKey(0)
    kx, kp = jax.random.split(key)
    x = jax.random.normal(kx, (B, T, E), jnp.float32)
    params = init_params(kp, E, n_heads, head_size, ff_hidden)

    out = transformer_block(x, params, n_heads=n_heads, head_size=head_size)
    out = jax.block_until_ready(out)

    assert out.shape == (B, T, E), out.shape
    assert bool(jnp.all(jnp.isfinite(out)))
    print("KERNEL_OK")
</pallas_src>

<mosaic_0001>
module attributes {stable_mosaic.version = 11 : i64} {
  func.func @transformer_block_kernel(%arg0: i32, %arg1: memref<16x32xf32, #tpu.memory_space<vmem>>, %arg2: memref<1x32xf32, #tpu.memory_space<vmem>>, %arg3: memref<1x32xf32, #tpu.memory_space<vmem>>, %arg4: memref<32x32xbf16, #tpu.memory_space<vmem>>, %arg5: memref<32x32xbf16, #tpu.memory_space<vmem>>, %arg6: memref<32x32xbf16, #tpu.memory_space<vmem>>, %arg7: memref<32x32xbf16, #tpu.memory_space<vmem>>, %arg8: memref<1x32xf32, #tpu.memory_space<vmem>>, %arg9: memref<1x32xf32, #tpu.memory_space<vmem>>, %arg10: memref<1x32xf32, #tpu.memory_space<vmem>>, %arg11: memref<32x128xbf16, #tpu.memory_space<vmem>>, %arg12: memref<1x128xf32, #tpu.memory_space<vmem>>, %arg13: memref<128x32xbf16, #tpu.memory_space<vmem>>, %arg14: memref<1x32xf32, #tpu.memory_space<vmem>>, %arg15: memref<16x32xf32, #tpu.memory_space<vmem>>) attributes {dimension_semantics = [#tpu.dimension_semantics<parallel>], iteration_bounds = array<i64: 1>, scalar_prefetch = 0 : i64, scratch_operands = 0 : i64, tpu.core_type = #tpu.core_type<tc>, window_params = [{transform_indices = @transform_0, window_bounds = array<i64: 16, 32>}, {pipeline_mode = #tpu.pipeline_mode<synchronous>, transform_indices = @transform_1, window_bounds = array<i64: 1, 32>}, {pipeline_mode = #tpu.pipeline_mode<synchronous>, transform_indices = @transform_2, window_bounds = array<i64: 1, 32>}, {pipeline_mode = #tpu.pipeline_mode<synchronous>, transform_indices = @transform_3, window_bounds = array<i64: 32, 32>}, {pipeline_mode = #tpu.pipeline_mode<synchronous>, transform_indices = @transform_4, window_bounds = array<i64: 32, 32>}, {pipeline_mode = #tpu.pipeline_mode<synchronous>, transform_indices = @transform_5, window_bounds = array<i64: 32, 32>}, {pipeline_mode = #tpu.pipeline_mode<synchronous>, transform_indices = @transform_6, window_bounds = array<i64: 32, 32>}, {pipeline_mode = #tpu.pipeline_mode<synchronous>, transform_indices = @transform_7, window_bounds = array<i64: 1, 32>}, {pipeline_mode = #tpu.pipeline_mode<synchronous>, transform_indices = @transform_8, window_bounds = array<i64: 1, 32>}, {pipeline_mode = #tpu.pipeline_mode<synchronous>, transform_indices = @transform_9, window_bounds = array<i64: 1, 32>}, {pipeline_mode = #tpu.pipeline_mode<synchronous>, transform_indices = @transform_10, window_bounds = array<i64: 32, 128>}, {pipeline_mode = #tpu.pipeline_mode<synchronous>, transform_indices = @transform_11, window_bounds = array<i64: 1, 128>}, {pipeline_mode = #tpu.pipeline_mode<synchronous>, transform_indices = @transform_12, window_bounds = array<i64: 128, 32>}, {pipeline_mode = #tpu.pipeline_mode<synchronous>, transform_indices = @transform_13, window_bounds = array<i64: 1, 32>}, {transform_indices = @transform_14, window_bounds = array<i64: 16, 32>}]} {
    %c0 = arith.constant 0 : index
    %c0_0 = arith.constant 0 : index
    %0 = vector.load %arg1[%c0, %c0_0] : memref<16x32xf32, #tpu.memory_space<vmem>>, vector<16x32xf32>
    %c0_1 = arith.constant 0 : index
    %c0_2 = arith.constant 0 : index
    %1 = vector.load %arg2[%c0_1, %c0_2] : memref<1x32xf32, #tpu.memory_space<vmem>>, vector<1x32xf32>
    %c0_3 = arith.constant 0 : index
    %c0_4 = arith.constant 0 : index
    %2 = vector.load %arg3[%c0_3, %c0_4] : memref<1x32xf32, #tpu.memory_space<vmem>>, vector<1x32xf32>
    %cst = arith.constant dense<0.000000e+00> : vector<16xf32>
    %3 = vector.multi_reduction <add>, %0, %cst [1] : vector<16x32xf32> to vector<16xf32>
    %4 = vector.shape_cast %3 : vector<16xf32> to vector<16x1xf32>
    %cst_5 = arith.constant 3.200000e+01 : f32
    %5 = vector.broadcast %cst_5 : f32 to vector<16x1xf32>
    %6 = arith.divf %4, %5 : vector<16x1xf32>
    %7 = vector.broadcast %6 : vector<16x1xf32> to vector<16x32xf32>
    %8 = arith.subf %0, %7 : vector<16x32xf32>
    %9 = arith.mulf %8, %8 : vector<16x32xf32>
    %cst_6 = arith.constant dense<0.000000e+00> : vector<16xf32>
    %10 = vector.multi_reduction <add>, %9, %cst_6 [1] : vector<16x32xf32> to vector<16xf32>
    %11 = vector.shape_cast %10 : vector<16xf32> to vector<16x1xf32>
    %cst_7 = arith.constant 0.0322580636 : f32
    %12 = vector.broadcast %cst_7 : f32 to vector<16x1xf32>
    %13 = arith.mulf %11, %12 : vector<16x1xf32>
    %14 = math.sqrt %13 : vector<16x1xf32>
    %cst_8 = arith.constant 9.99999997E-7 : f32
    %15 = vector.broadcast %cst_8 : f32 to vector<16x1xf32>
    %16 = arith.addf %14, %15 : vector<16x1xf32>
    %17 = tpu.reciprocal %16 {approx = true} : vector<16x1xf32> -> vector<16x1xf32>
    %18 = vector.broadcast %17 : vector<16x1xf32> to vector<16x32xf32>
    %19 = arith.mulf %8, %18 : vector<16x32xf32>
    %20 = vector.broadcast %1 : vector<1x32xf32> to vector<16x32xf32>
    %21 = arith.mulf %20, %19 : vector<16x32xf32>
    %22 = vector.broadcast %2 : vector<1x32xf32> to vector<16x32xf32>
    %23 = arith.addf %21, %22 : vector<16x32xf32>
    %24 = arith.truncf %23 : vector<16x32xf32> to vector<16x32xbf16>
    %c0_9 = arith.constant 0 : index
    %c0_10 = arith.constant 0 : index
    %25 = vector.load %arg4[%c0_9, %c0_10] : memref<32x32xbf16, #tpu.memory_space<vmem>>, vector<32x32xbf16>
    %cst_11 = arith.constant dense<0.000000e+00> : vector<16x32xf32>
    %26 = tpu.matmul %24, %25, %cst_11 {dimension_numbers = #tpu.dot_dimension_numbers<[1], [0], [0], [1], [0, 0, 1, 1], [], []>} : vector<16x32xbf16>, vector<32x32xbf16>, vector<16x32xf32> -> vector<16x32xf32>
    %c0_12 = arith.constant 0 : index
    %c0_13 = arith.constant 0 : index
    %27 = vector.load %arg5[%c0_12, %c0_13] : memref<32x32xbf16, #tpu.memory_space<vmem>>, vector<32x32xbf16>
    %cst_14 = arith.constant dense<0.000000e+00> : vector<16x32xf32>
    %28 = tpu.matmul %24, %27, %cst_14 {dimension_numbers = #tpu.dot_dimension_numbers<[1], [0], [0], [1], [0, 0, 1, 1], [], []>} : vector<16x32xbf16>, vector<32x32xbf16>, vector<16x32xf32> -> vector<16x32xf32>
    %c0_15 = arith.constant 0 : index
    %c0_16 = arith.constant 0 : index
    %29 = vector.load %arg6[%c0_15, %c0_16] : memref<32x32xbf16, #tpu.memory_space<vmem>>, vector<32x32xbf16>
    %cst_17 = arith.constant dense<0.000000e+00> : vector<16x32xf32>
    %30 = tpu.matmul %24, %29, %cst_17 {dimension_numbers = #tpu.dot_dimension_numbers<[1], [0], [0], [1], [0, 0, 1, 1], [], []>} : vector<16x32xbf16>, vector<32x32xbf16>, vector<16x32xf32> -> vector<16x32xf32>
    %31 = vector.shape_cast %26 : vector<16x32xf32> to vector<2x8x32xf32>
    %32 = arith.truncf %31 : vector<2x8x32xf32> to vector<2x8x32xbf16>
    %33 = vector.shape_cast %28 : vector<16x32xf32> to vector<2x8x32xf32>
    %34 = arith.truncf %33 : vector<2x8x32xf32> to vector<2x8x32xbf16>
    %35 = vector.shape_cast %30 : vector<16x32xf32> to vector<2x8x32xf32>
    %36 = arith.truncf %35 : vector<2x8x32xf32> to vector<2x8x32xbf16>
    %37 = tpu.iota {dimensions = array<i32: 0>} : vector<8x8xi32>
    %38 = tpu.iota {dimensions = array<i32: 1>} : vector<8x8xi32>
    %39 = arith.cmpi sge, %37, %38 : vector<8x8xi32>
    %40 = vector.shape_cast %39 : vector<8x8xi1> to vector<1x8x8xi1>
    %cst_18 = arith.constant 0.000000e+00 : f32
    %41 = vector.broadcast %cst_18 : f32 to vector<16x32xf32>
    %42 = vector.extract_strided_slice %32 {offsets = [0, 0, 0], sizes = [2, 8, 8], strides = [1, 1, 1]} : vector<2x8x32xbf16> to vector<2x8x8xbf16>
    %43 = vector.extract_strided_slice %34 {offsets = [0, 0, 0], sizes = [2, 8, 8], strides = [1, 1, 1]} : vector<2x8x32xbf16> to vector<2x8x8xbf16>
    %44 = vector.extract_strided_slice %36 {offsets = [0, 0, 0], sizes = [2, 8, 8], strides = [1, 1, 1]} : vector<2x8x32xbf16> to vector<2x8x8xbf16>
    "tpu.trace_start"() <{level = 10 : i32, message = "btd,bsd->bts"}> : () -> ()
    %cst_19 = arith.constant dense<0.000000e+00> : vector<2x8x8xf32>
    %45 = tpu.matmul %42, %43, %cst_19 {dimension_numbers = #tpu.dot_dimension_numbers<[2], [2], [1], [1], [0, 0, 0, 1, 1, 1], [0], [0]>} : vector<2x8x8xbf16>, vector<2x8x8xbf16>, vector<2x8x8xf32> -> vector<2x8x8xf32>
    "tpu.trace_stop"() : () -> ()
    %cst_20 = arith.constant 0.353553385 : f32
    %46 = vector.broadcast %cst_20 : f32 to vector<2x8x8xf32>
    %47 = arith.mulf %45, %46 : vector<2x8x8xf32>
    %cst_21 = arith.constant -1.000000e+30 : f32
    %48 = vector.shape_cast %40 : vector<1x8x8xi1> to vector<1x8x8xi1>
    %49 = vector.broadcast %48 : vector<1x8x8xi1> to vector<2x8x8xi1>
    %50 = vector.broadcast %cst_21 : f32 to vector<2x8x8xf32>
    %51 = arith.select %49, %47, %50 : vector<2x8x8xi1>, vector<2x8x8xf32>
    %cst_22 = arith.constant dense<0xFF800000> : vector<2x8xf32>
    %52 = vector.multi_reduction <maximumf>, %51, %cst_22 [2] : vector<2x8x8xf32> to vector<2x8xf32>
    %53 = vector.shape_cast %52 : vector<2x8xf32> to vector<2x8x1xf32>
    %54 = vector.broadcast %53 : vector<2x8x1xf32> to vector<2x8x8xf32>
    %55 = arith.subf %51, %54 : vector<2x8x8xf32>
    %56 = math.exp %55 : vector<2x8x8xf32>
    %cst_23 = arith.constant dense<0.000000e+00> : vector<2x8xf32>
    %57 = vector.multi_reduction <add>, %56, %cst_23 [2] : vector<2x8x8xf32> to vector<2x8xf32>
    %58 = vector.shape_cast %57 : vector<2x8xf32> to vector<2x8x1xf32>
    %59 = tpu.reciprocal %58 {approx = true} : vector<2x8x1xf32> -> vector<2x8x1xf32>
    %60 = vector.broadcast %59 : vector<2x8x1xf32> to vector<2x8x8xf32>
    %61 = arith.mulf %56, %60 : vector<2x8x8xf32>
    %62 = arith.truncf %61 : vector<2x8x8xf32> to vector<2x8x8xbf16>
    "tpu.trace_start"() <{level = 10 : i32, message = "bts,bsd->btd"}> : () -> ()
    %cst_24 = arith.constant dense<0.000000e+00> : vector<2x8x8xf32>
    %63 = tpu.matmul %62, %44, %cst_24 {dimension_numbers = #tpu.dot_dimension_numbers<[2], [1], [1], [2], [0, 0, 0, 1, 1, 2], [0], [0]>} : vector<2x8x8xbf16>, vector<2x8x8xbf16>, vector<2x8x8xf32> -> vector<2x8x8xf32>
    "tpu.trace_stop"() : () -> ()
    %64 = vector.shape_cast %63 : vector<2x8x8xf32> to vector<16x8xf32>
    %65 = arith.truncf %64 : vector<16x8xf32> to vector<16x8xbf16>
    %c0_25 = arith.constant 0 : index
    %c0_26 = arith.constant 0 : index
    %66 = vector.load %arg7[%c0_25, %c0_26] : memref<32x32xbf16, #tpu.memory_space<vmem>>, vector<8x32xbf16>
    %cst_27 = arith.constant dense<0.000000e+00> : vector<16x32xf32>
    %67 = tpu.matmul %65, %66, %cst_27 {dimension_numbers = #tpu.dot_dimension_numbers<[1], [0], [0], [1], [0, 0, 1, 1], [], []>} : vector<16x8xbf16>, vector<8x32xbf16>, vector<16x32xf32> -> vector<16x32xf32>
    %68 = arith.addf %41, %67 : vector<16x32xf32>
    %69 = vector.extract_strided_slice %32 {offsets = [0, 0, 8], sizes = [2, 8, 8], strides = [1, 1, 1]} : vector<2x8x32xbf16> to vector<2x8x8xbf16>
    %70 = vector.extract_strided_slice %34 {offsets = [0, 0, 8], sizes = [2, 8, 8], strides = [1, 1, 1]} : vector<2x8x32xbf16> to vector<2x8x8xbf16>
    %71 = vector.extract_strided_slice %36 {offsets = [0, 0, 8], sizes = [2, 8, 8], strides = [1, 1, 1]} : vector<2x8x32xbf16> to vector<2x8x8xbf16>
    "tpu.trace_start"() <{level = 10 : i32, message = "btd,bsd->bts"}> : () -> ()
    %cst_28 = arith.constant dense<0.000000e+00> : vector<2x8x8xf32>
    %72 = tpu.matmul %69, %70, %cst_28 {dimension_numbers = #tpu.dot_dimension_numbers<[2], [2], [1], [1], [0, 0, 0, 1, 1, 1], [0], [0]>} : vector<2x8x8xbf16>, vector<2x8x8xbf16>, vector<2x8x8xf32> -> vector<2x8x8xf32>
    "tpu.trace_stop"() : () -> ()
    %cst_29 = arith.constant 0.353553385 : f32
    %73 = vector.broadcast %cst_29 : f32 to vector<2x8x8xf32>
    %74 = arith.mulf %72, %73 : vector<2x8x8xf32>
    %cst_30 = arith.constant -1.000000e+30 : f32
    %75 = vector.shape_cast %40 : vector<1x8x8xi1> to vector<1x8x8xi1>
    %76 = vector.broadcast %75 : vector<1x8x8xi1> to vector<2x8x8xi1>
    %77 = vector.broadcast %cst_30 : f32 to vector<2x8x8xf32>
    %78 = arith.select %76, %74, %77 : vector<2x8x8xi1>, vector<2x8x8xf32>
    %cst_31 = arith.constant dense<0xFF800000> : vector<2x8xf32>
    %79 = vector.multi_reduction <maximumf>, %78, %cst_31 [2] : vector<2x8x8xf32> to vector<2x8xf32>
    %80 = vector.shape_cast %79 : vector<2x8xf32> to vector<2x8x1xf32>
    %81 = vector.broadcast %80 : vector<2x8x1xf32> to vector<2x8x8xf32>
    %82 = arith.subf %78, %81 : vector<2x8x8xf32>
    %83 = math.exp %82 : vector<2x8x8xf32>
    %cst_32 = arith.constant dense<0.000000e+00> : vector<2x8xf32>
    %84 = vector.multi_reduction <add>, %83, %cst_32 [2] : vector<2x8x8xf32> to vector<2x8xf32>
    %85 = vector.shape_cast %84 : vector<2x8xf32> to vector<2x8x1xf32>
    %86 = tpu.reciprocal %85 {approx = true} : vector<2x8x1xf32> -> vector<2x8x1xf32>
    %87 = vector.broadcast %86 : vector<2x8x1xf32> to vector<2x8x8xf32>
    %88 = arith.mulf %83, %87 : vector<2x8x8xf32>
    %89 = arith.truncf %88 : vector<2x8x8xf32> to vector<2x8x8xbf16>
    "tpu.trace_start"() <{level = 10 : i32, message = "bts,bsd->btd"}> : () -> ()
    %cst_33 = arith.constant dense<0.000000e+00> : vector<2x8x8xf32>
    %90 = tpu.matmul %89, %71, %cst_33 {dimension_numbers = #tpu.dot_dimension_numbers<[2], [1], [1], [2], [0, 0, 0, 1, 1, 2], [0], [0]>} : vector<2x8x8xbf16>, vector<2x8x8xbf16>, vector<2x8x8xf32> -> vector<2x8x8xf32>
    "tpu.trace_stop"() : () -> ()
    %91 = vector.shape_cast %90 : vector<2x8x8xf32> to vector<16x8xf32>
    %92 = arith.truncf %91 : vector<16x8xf32> to vector<16x8xbf16>
    %c8 = arith.constant 8 : index
    %c0_34 = arith.constant 0 : index
    %93 = vector.load %arg7[%c8, %c0_34] : memref<32x32xbf16, #tpu.memory_space<vmem>>, vector<8x32xbf16>
    %cst_35 = arith.constant dense<0.000000e+00> : vector<16x32xf32>
    %94 = tpu.matmul %92, %93, %cst_35 {dimension_numbers = #tpu.dot_dimension_numbers<[1], [0], [0], [1], [0, 0, 1, 1], [], []>} : vector<16x8xbf16>, vector<8x32xbf16>, vector<16x32xf32> -> vector<16x32xf32>
    %95 = arith.addf %68, %94 : vector<16x32xf32>
    %96 = vector.extract_strided_slice %32 {offsets = [0, 0, 16], sizes = [2, 8, 8], strides = [1, 1, 1]} : vector<2x8x32xbf16> to vector<2x8x8xbf16>
    %97 = vector.extract_strided_slice %34 {offsets = [0, 0, 16], sizes = [2, 8, 8], strides = [1, 1, 1]} : vector<2x8x32xbf16> to vector<2x8x8xbf16>
    %98 = vector.extract_strided_slice %36 {offsets = [0, 0, 16], sizes = [2, 8, 8], strides = [1, 1, 1]} : vector<2x8x32xbf16> to vector<2x8x8xbf16>
    "tpu.trace_start"() <{level = 10 : i32, message = "btd,bsd->bts"}> : () -> ()
    %cst_36 = arith.constant dense<0.000000e+00> : vector<2x8x8xf32>
    %99 = tpu.matmul %96, %97, %cst_36 {dimension_numbers = #tpu.dot_dimension_numbers<[2], [2], [1], [1], [0, 0, 0, 1, 1, 1], [0], [0]>} : vector<2x8x8xbf16>, vector<2x8x8xbf16>, vector<2x8x8xf32> -> vector<2x8x8xf32>
    "tpu.trace_stop"() : () -> ()
    %cst_37 = arith.constant 0.353553385 : f32
    %100 = vector.broadcast %cst_37 : f32 to vector<2x8x8xf32>
    %101 = arith.mulf %99, %100 : vector<2x8x8xf32>
    %cst_38 = arith.constant -1.000000e+30 : f32
    %102 = vector.shape_cast %40 : vector<1x8x8xi1> to vector<1x8x8xi1>
    %103 = vector.broadcast %102 : vector<1x8x8xi1> to vector<2x8x8xi1>
    %104 = vector.broadcast %cst_38 : f32 to vector<2x8x8xf32>
    %105 = arith.select %103, %101, %104 : vector<2x8x8xi1>, vector<2x8x8xf32>
    %cst_39 = arith.constant dense<0xFF800000> : vector<2x8xf32>
    %106 = vector.multi_reduction <maximumf>, %105, %cst_39 [2] : vector<2x8x8xf32> to vector<2x8xf32>
    %107 = vector.shape_cast %106 : vector<2x8xf32> to vector<2x8x1xf32>
    %108 = vector.broadcast %107 : vector<2x8x1xf32> to vector<2x8x8xf32>
    %109 = arith.subf %105, %108 : vector<2x8x8xf32>
    %110 = math.exp %109 : vector<2x8x8xf32>
    %cst_40 = arith.constant dense<0.000000e+00> : vector<2x8xf32>
    %111 = vector.multi_reduction <add>, %110, %cst_40 [2] : vector<2x8x8xf32> to vector<2x8xf32>
    %112 = vector.shape_cast %111 : vector<2x8xf32> to vector<2x8x1xf32>
    %113 = tpu.reciprocal %112 {approx = true} : vector<2x8x1xf32> -> vector<2x8x1xf32>
    %114 = vector.broadcast %113 : vector<2x8x1xf32> to vector<2x8x8xf32>
    %115 = arith.mulf %110, %114 : vector<2x8x8xf32>
    %116 = arith.truncf %115 : vector<2x8x8xf32> to vector<2x8x8xbf16>
    "tpu.trace_start"() <{level = 10 : i32, message = "bts,bsd->btd"}> : () -> ()
    %cst_41 = arith.constant dense<0.000000e+00> : vector<2x8x8xf32>
    %117 = tpu.matmul %116, %98, %cst_41 {dimension_numbers = #tpu.dot_dimension_numbers<[2], [1], [1], [2], [0, 0, 0, 1, 1, 2], [0], [0]>} : vector<2x8x8xbf16>, vector<2x8x8xbf16>, vector<2x8x8xf32> -> vector<2x8x8xf32>
    "tpu.trace_stop"() : () -> ()
    %118 = vector.shape_cast %117 : vector<2x8x8xf32> to vector<16x8xf32>
    %119 = arith.truncf %118 : vector<16x8xf32> to vector<16x8xbf16>
    %c16 = arith.constant 16 : index
    %c0_42 = arith.constant 0 : index
    %120 = vector.load %arg7[%c16, %c0_42] : memref<32x32xbf16, #tpu.memory_space<vmem>>, vector<8x32xbf16>
    %cst_43 = arith.constant dense<0.000000e+00> : vector<16x32xf32>
    %121 = tpu.matmul %119, %120, %cst_43 {dimension_numbers = #tpu.dot_dimension_numbers<[1], [0], [0], [1], [0, 0, 1, 1], [], []>} : vector<16x8xbf16>, vector<8x32xbf16>, vector<16x32xf32> -> vector<16x32xf32>
    %122 = arith.addf %95, %121 : vector<16x32xf32>
    %123 = vector.extract_strided_slice %32 {offsets = [0, 0, 24], sizes = [2, 8, 8], strides = [1, 1, 1]} : vector<2x8x32xbf16> to vector<2x8x8xbf16>
    %124 = vector.extract_strided_slice %34 {offsets = [0, 0, 24], sizes = [2, 8, 8], strides = [1, 1, 1]} : vector<2x8x32xbf16> to vector<2x8x8xbf16>
    %125 = vector.extract_strided_slice %36 {offsets = [0, 0, 24], sizes = [2, 8, 8], strides = [1, 1, 1]} : vector<2x8x32xbf16> to vector<2x8x8xbf16>
    "tpu.trace_start"() <{level = 10 : i32, message = "btd,bsd->bts"}> : () -> ()
    %cst_44 = arith.constant dense<0.000000e+00> : vector<2x8x8xf32>
    %126 = tpu.matmul %123, %124, %cst_44 {dimension_numbers = #tpu.dot_dimension_numbers<[2], [2], [1], [1], [0, 0, 0, 1, 1, 1], [0], [0]>} : vector<2x8x8xbf16>, vector<2x8x8xbf16>, vector<2x8x8xf32> -> vector<2x8x8xf32>
    "tpu.trace_stop"() : () -> ()
    %cst_45 = arith.constant 0.353553385 : f32
    %127 = vector.broadcast %cst_45 : f32 to vector<2x8x8xf32>
    %128 = arith.mulf %126, %127 : vector<2x8x8xf32>
    %cst_46 = arith.constant -1.000000e+30 : f32
    %129 = vector.shape_cast %40 : vector<1x8x8xi1> to vector<1x8x8xi1>
    %130 = vector.broadcast %129 : vector<1x8x8xi1> to vector<2x8x8xi1>
    %131 = vector.broadcast %cst_46 : f32 to vector<2x8x8xf32>
    %132 = arith.select %130, %128, %131 : vector<2x8x8xi1>, vector<2x8x8xf32>
    %cst_47 = arith.constant dense<0xFF800000> : vector<2x8xf32>
    %133 = vector.multi_reduction <maximumf>, %132, %cst_47 [2] : vector<2x8x8xf32> to vector<2x8xf32>
    %134 = vector.shape_cast %133 : vector<2x8xf32> to vector<2x8x1xf32>
    %135 = vector.broadcast %134 : vector<2x8x1xf32> to vector<2x8x8xf32>
    %136 = arith.subf %132, %135 : vector<2x8x8xf32>
    %137 = math.exp %136 : vector<2x8x8xf32>
    %cst_48 = arith.constant dense<0.000000e+00> : vector<2x8xf32>
    %138 = vector.multi_reduction <add>, %137, %cst_48 [2] : vector<2x8x8xf32> to vector<2x8xf32>
    %139 = vector.shape_cast %138 : vector<2x8xf32> to vector<2x8x1xf32>
    %140 = tpu.reciprocal %139 {approx = true} : vector<2x8x1xf32> -> vector<2x8x1xf32>
    %141 = vector.broadcast %140 : vector<2x8x1xf32> to vector<2x8x8xf32>
    %142 = arith.mulf %137, %141 : vector<2x8x8xf32>
    %143 = arith.truncf %142 : vector<2x8x8xf32> to vector<2x8x8xbf16>
    "tpu.trace_start"() <{level = 10 : i32, message = "bts,bsd->btd"}> : () -> ()
    %cst_49 = arith.constant dense<0.000000e+00> : vector<2x8x8xf32>
    %144 = tpu.matmul %143, %125, %cst_49 {dimension_numbers = #tpu.dot_dimension_numbers<[2], [1], [1], [2], [0, 0, 0, 1, 1, 2], [0], [0]>} : vector<2x8x8xbf16>, vector<2x8x8xbf16>, vector<2x8x8xf32> -> vector<2x8x8xf32>
    "tpu.trace_stop"() : () -> ()
    %145 = vector.shape_cast %144 : vector<2x8x8xf32> to vector<16x8xf32>
    %146 = arith.truncf %145 : vector<16x8xf32> to vector<16x8xbf16>
    %c24 = arith.constant 24 : index
    %c0_50 = arith.constant 0 : index
    %147 = vector.load %arg7[%c24, %c0_50] : memref<32x32xbf16, #tpu.memory_space<vmem>>, vector<8x32xbf16>
    %cst_51 = arith.constant dense<0.000000e+00> : vector<16x32xf32>
    %148 = tpu.matmul %146, %147, %cst_51 {dimension_numbers = #tpu.dot_dimension_numbers<[1], [0], [0], [1], [0, 0, 1, 1], [], []>} : vector<16x8xbf16>, vector<8x32xbf16>, vector<16x32xf32> -> vector<16x32xf32>
    %149 = arith.addf %122, %148 : vector<16x32xf32>
    %c0_52 = arith.constant 0 : index
    %c0_53 = arith.constant 0 : index
    %150 = vector.load %arg8[%c0_52, %c0_53] : memref<1x32xf32, #tpu.memory_space<vmem>>, vector<1x32xf32>
    %151 = vector.broadcast %150 : vector<1x32xf32> to vector<16x32xf32>
    %152 = arith.addf %149, %151 : vector<16x32xf32>
    %153 = arith.addf %152, %23 : vector<16x32xf32>
    %c0_54 = arith.constant 0 : index
    %c0_55 = arith.constant 0 : index
    %154 = vector.load %arg9[%c0_54, %c0_55] : memref<1x32xf32, #tpu.memory_space<vmem>>, vector<1x32xf32>
    %c0_56 = arith.constant 0 : index
    %c0_57 = arith.constant 0 : index
    %155 = vector.load %arg10[%c0_56, %c0_57] : memref<1x32xf32, #tpu.memory_space<vmem>>, vector<1x32xf32>
    %cst_58 = arith.constant dense<0.000000e+00> : vector<16xf32>
    %156 = vector.multi_reduction <add>, %153, %cst_58 [1] : vector<16x32xf32> to vector<16xf32>
    %157 = vector.shape_cast %156 : vector<16xf32> to vector<16x1xf32>
    %cst_59 = arith.constant 3.200000e+01 : f32
    %158 = vector.broadcast %cst_59 : f32 to vector<16x1xf32>
    %159 = arith.divf %157, %158 : vector<16x1xf32>
    %160 = vector.broadcast %159 : vector<16x1xf32> to vector<16x32xf32>
    %161 = arith.subf %153, %160 : vector<16x32xf32>
    %162 = arith.mulf %161, %161 : vector<16x32xf32>
    %cst_60 = arith.constant dense<0.000000e+00> : vector<16xf32>
    %163 = vector.multi_reduction <add>, %162, %cst_60 [1] : vector<16x32xf32> to vector<16xf32>
    %164 = vector.shape_cast %163 : vector<16xf32> to vector<16x1xf32>
    %cst_61 = arith.constant 0.0322580636 : f32
    %165 = vector.broadcast %cst_61 : f32 to vector<16x1xf32>
    %166 = arith.mulf %164, %165 : vector<16x1xf32>
    %167 = math.sqrt %166 : vector<16x1xf32>
    %cst_62 = arith.constant 9.99999997E-7 : f32
    %168 = vector.broadcast %cst_62 : f32 to vector<16x1xf32>
    %169 = arith.addf %167, %168 : vector<16x1xf32>
    %170 = tpu.reciprocal %169 {approx = true} : vector<16x1xf32> -> vector<16x1xf32>
    %171 = vector.broadcast %170 : vector<16x1xf32> to vector<16x32xf32>
    %172 = arith.mulf %161, %171 : vector<16x32xf32>
    %173 = vector.broadcast %154 : vector<1x32xf32> to vector<16x32xf32>
    %174 = arith.mulf %173, %172 : vector<16x32xf32>
    %175 = vector.broadcast %155 : vector<1x32xf32> to vector<16x32xf32>
    %176 = arith.addf %174, %175 : vector<16x32xf32>
    %177 = arith.truncf %176 : vector<16x32xf32> to vector<16x32xbf16>
    %c0_63 = arith.constant 0 : index
    %c0_64 = arith.constant 0 : index
    %178 = vector.load %arg11[%c0_63, %c0_64] : memref<32x128xbf16, #tpu.memory_space<vmem>>, vector<32x128xbf16>
    %cst_65 = arith.constant dense<0.000000e+00> : vector<16x128xf32>
    %179 = tpu.matmul %177, %178, %cst_65 {dimension_numbers = #tpu.dot_dimension_numbers<[1], [0], [0], [1], [0, 0, 1, 1], [], []>} : vector<16x32xbf16>, vector<32x128xbf16>, vector<16x128xf32> -> vector<16x128xf32>
    %c0_66 = arith.constant 0 : index
    %c0_67 = arith.constant 0 : index
    %180 = vector.load %arg12[%c0_66, %c0_67] : memref<1x128xf32, #tpu.memory_space<vmem>>, vector<1x128xf32>
    %181 = vector.broadcast %180 : vector<1x128xf32> to vector<16x128xf32>
    %182 = arith.addf %179, %181 : vector<16x128xf32>
    %cst_68 = arith.constant 0.000000e+00 : f32
    %183 = vector.broadcast %cst_68 : f32 to vector<16x128xf32>
    %184 = arith.maximumf %182, %183 : vector<16x128xf32>
    %185 = arith.truncf %184 : vector<16x128xf32> to vector<16x128xbf16>
    %c0_69 = arith.constant 0 : index
    %c0_70 = arith.constant 0 : index
    %186 = vector.load %arg13[%c0_69, %c0_70] : memref<128x32xbf16, #tpu.memory_space<vmem>>, vector<128x32xbf16>
    %cst_71 = arith.constant dense<0.000000e+00> : vector<16x32xf32>
    %187 = tpu.matmul %185, %186, %cst_71 {dimension_numbers = #tpu.dot_dimension_numbers<[1], [0], [0], [1], [0, 0, 1, 1], [], []>} : vector<16x128xbf16>, vector<128x32xbf16>, vector<16x32xf32> -> vector<16x32xf32>
    %c0_72 = arith.constant 0 : index
    %c0_73 = arith.constant 0 : index
    %188 = vector.load %arg14[%c0_72, %c0_73] : memref<1x32xf32, #tpu.memory_space<vmem>>, vector<1x32xf32>
    %189 = vector.broadcast %188 : vector<1x32xf32> to vector<16x32xf32>
    %190 = arith.addf %187, %189 : vector<16x32xf32>
    %191 = arith.addf %190, %176 : vector<16x32xf32>
    %c0_74 = arith.constant 0 : index
    %c0_75 = arith.constant 0 : index
    %192 = vector.load %arg15[%c0_74, %c0_75] : memref<16x32xf32, #tpu.memory_space<vmem>>, vector<16x32xf32>
    tpu.vector_store %arg15[%c0_74, %c0_75], %191 {strides = array<i32>} : memref<16x32xf32, #tpu.memory_space<vmem>>, vector<16x32xf32>,
    return
  }
  func.func @transform_0(%arg0: i32) -> (i32, i32) {
    %c0_i32 = arith.constant 0 : i32
    %c0_i32_0 = arith.constant 0 : i32
    return %arg0, %c0_i32 : i32, i32
  }
  func.func @transform_1(%arg0: i32) -> (i32, i32) {
    %c0_i32 = arith.constant 0 : i32
    %c0_i32_0 = arith.constant 0 : i32
    %c0_i32_1 = arith.constant 0 : i32
    return %c0_i32, %c0_i32_0 : i32, i32
  }
  func.func @transform_2(%arg0: i32) -> (i32, i32) {
    %c0_i32 = arith.constant 0 : i32
    %c0_i32_0 = arith.constant 0 : i32
    %c0_i32_1 = arith.constant 0 : i32
    return %c0_i32, %c0_i32_0 : i32, i32
  }
  func.func @transform_3(%arg0: i32) -> (i32, i32) {
    %c0_i32 = arith.constant 0 : i32
    %c0_i32_0 = arith.constant 0 : i32
    %c0_i32_1 = arith.constant 0 : i32
    return %c0_i32, %c0_i32_0 : i32, i32
  }
  func.func @transform_4(%arg0: i32) -> (i32, i32) {
    %c0_i32 = arith.constant 0 : i32
    %c0_i32_0 = arith.constant 0 : i32
    %c0_i32_1 = arith.constant 0 : i32
    return %c0_i32, %c0_i32_0 : i32, i32
  }
  func.func @transform_5(%arg0: i32) -> (i32, i32) {
    %c0_i32 = arith.constant 0 : i32
    %c0_i32_0 = arith.constant 0 : i32
    %c0_i32_1 = arith.constant 0 : i32
    return %c0_i32, %c0_i32_0 : i32, i32
  }
  func.func @transform_6(%arg0: i32) -> (i32, i32) {
    %c0_i32 = arith.constant 0 : i32
    %c0_i32_0 = arith.constant 0 : i32
    %c0_i32_1 = arith.constant 0 : i32
    return %c0_i32, %c0_i32_0 : i32, i32
  }
  func.func @transform_7(%arg0: i32) -> (i32, i32) {
    %c0_i32 = arith.constant 0 : i32
    %c0_i32_0 = arith.constant 0 : i32
    %c0_i32_1 = arith.constant 0 : i32
    return %c0_i32, %c0_i32_0 : i32, i32
  }
  func.func @transform_8(%arg0: i32) -> (i32, i32) {
    %c0_i32 = arith.constant 0 : i32
    %c0_i32_0 = arith.constant 0 : i32
    %c0_i32_1 = arith.constant 0 : i32
    return %c0_i32, %c0_i32_0 : i32, i32
  }
  func.func @transform_9(%arg0: i32) -> (i32, i32) {
    %c0_i32 = arith.constant 0 : i32
    %c0_i32_0 = arith.constant 0 : i32
    %c0_i32_1 = arith.constant 0 : i32
    return %c0_i32, %c0_i32_0 : i32, i32
  }
  func.func @transform_10(%arg0: i32) -> (i32, i32) {
    %c0_i32 = arith.constant 0 : i32
    %c0_i32_0 = arith.constant 0 : i32
    %c0_i32_1 = arith.constant 0 : i32
    return %c0_i32, %c0_i32_0 : i32, i32
  }
  func.func @transform_11(%arg0: i32) -> (i32, i32) {
    %c0_i32 = arith.constant 0 : i32
    %c0_i32_0 = arith.constant 0 : i32
    %c0_i32_1 = arith.constant 0 : i32
    return %c0_i32, %c0_i32_0 : i32, i32
  }
  func.func @transform_12(%arg0: i32) -> (i32, i32) {
    %c0_i32 = arith.constant 0 : i32
    %c0_i32_0 = arith.constant 0 : i32
    %c0_i32_1 = arith.constant 0 : i32
    return %c0_i32, %c0_i32_0 : i32, i32
  }
  func.func @transform_13(%arg0: i32) -> (i32, i32) {
    %c0_i32 = arith.constant 0 : i32
    %c0_i32_0 = arith.constant 0 : i32
    %c0_i32_1 = arith.constant 0 : i32
    return %c0_i32, %c0_i32_0 : i32, i32
  }
  func.func @transform_14(%arg0: i32) -> (i32, i32) {
    %c0_i32 = arith.constant 0 : i32
    %c0_i32_0 = arith.constant 0 : i32
    return %arg0, %c0_i32 : i32, i32
  }
}

</mosaic_0001>

<llo_original>
// kernel: tpu_custom_call.1
$region0: #{tpu_custom_call.1}
  #allocation0 [shape = 'u32[]', space=smem, size = 0x4, offset = 0x4, fixed_abs, tag = 'smem constant byte address 0x4 - core index']
  #allocation1 [shape = 'u32[144,128]{1,0:T(1,128)}', space=vmem, size = 0x12000, scoped, tag = 'internal scratch']
  %s0 = inlined_call_operand.vmem [shape: f32[16,32], index: 0, kind: input, shape index: {}]
  %s1 = inlined_call_operand.vmem [shape: f32[1,32], index: 1, kind: input, shape index: {}]
  %s2 = inlined_call_operand.vmem [shape: f32[1,32], index: 2, kind: input, shape index: {}]
  %s3 = inlined_call_operand.vmem [shape: bf16[32,32], index: 3, kind: input, shape index: {}]
  %s4 = inlined_call_operand.vmem [shape: bf16[32,32], index: 4, kind: input, shape index: {}]
  %s5 = inlined_call_operand.vmem [shape: bf16[32,32], index: 5, kind: input, shape index: {}]
  %s6 = inlined_call_operand.vmem [shape: bf16[32,32], index: 6, kind: input, shape index: {}]
  %s7 = inlined_call_operand.hbm [shape: f32[1,32], index: 7, kind: input, shape index: {}]
  %s8 = inlined_call_operand.hbm [shape: f32[1,32], index: 8, kind: input, shape index: {}]
  %s9 = inlined_call_operand.hbm [shape: f32[1,32], index: 9, kind: input, shape index: {}]
  %s10 = inlined_call_operand.vmem [shape: bf16[32,128], index: 10, kind: input, shape index: {}]
  %s11 = inlined_call_operand.vmem [shape: f32[1,128], index: 11, kind: input, shape index: {}]
  %s12 = inlined_call_operand.vmem [shape: bf16[128,32], index: 12, kind: input, shape index: {}]
  %s13 = inlined_call_operand.vmem [shape: f32[1,32], index: 13, kind: input, shape index: {}]
  %s14 = inlined_call_operand.hbm [shape: f32[16,32], index: 14, kind: output, shape index: {}]
  %s15 = sld [smem:[#allocation0]]
  $region78: #{tpu_custom_call.1} parent=0
    _
  %s17 = ssub.s32 1, %s15
  %s18 = scalar_select 0, %s17, %s15
  $region1: #{tpu_custom_call.1} parent=0
    #allocation2 [shape = 'u8[512]{0}', space=vmem, size = 0x400, scoped, tag = 'input window, operand 7, single buffered']
    #allocation3 [shape = 's32[1]{0}', space=sflag, size = 0x4, scoped, tag = 'scoped memory for tpu_custom_call.1']
    #allocation4 [shape = 's32[1]{0}', space=sflag, size = 0x4, scoped, tag = 'scoped memory for tpu_custom_call.1']
    #allocation5 [shape = 'u8[512]{0}', space=vmem, size = 0x400, scoped, tag = 'input window, operand 8, single buffered']
    #allocation6 [shape = 's32[1]{0}', space=sflag, size = 0x4, scoped, tag = 'scoped memory for tpu_custom_call.1']
    #allocation7 [shape = 'u8[512]{0}', space=vmem, size = 0x400, scoped, tag = 'input window, operand 9, single buffered']
    #allocation8 [shape = 'u8[8192]{0}', space=vmem, size = 0x2000, scoped, tag = 'output window, operand 0, single buffered']
    %19 = vsyncpa [#allocation3], 0
    %20 = vsyncpa [#allocation6], 0
    %21 = vsyncpa [#allocation4], 0
    // Predicated region
    $region2: #{tpu_custom_call.1} parent=1 // pred_check
      _
    $region3: #{tpu_custom_call.1} parent=1 // pred_check_branch
      %23 = sbr.rel (0) target = $region5
    $region4: #{tpu_custom_call.1} parent=1 // pred_region
      _
    $region5: #{tpu_custom_call.1} parent=1 // pred_fallthru
      _
    // Predicated region
    $region6: #{tpu_custom_call.1} parent=1 // pred_check
      _
    $region7: #{tpu_custom_call.1} parent=1 // pred_check_branch
      %25 = sbr.rel (0) target = $region9
    $region8: #{tpu_custom_call.1} parent=1 // pred_region
      _
    $region9: #{tpu_custom_call.1} parent=1 // pred_fallthru
      _
    // Predicated region
    $region10: #{tpu_custom_call.1} parent=1 // pred_check
      _
    $region11: #{tpu_custom_call.1} parent=1 // pred_check_branch
      %27 = sbr.rel (0) target = $region13
    $region12: #{tpu_custom_call.1} parent=1 // pred_region
      _
    $region13: #{tpu_custom_call.1} parent=1 // pred_fallthru
      _
    // Predicated region
    $region14: #{tpu_custom_call.1} parent=1 // pred_check
      _
    $region15: #{tpu_custom_call.1} parent=1 // pred_check_branch
      %29 = sbr.rel (0) target = $region17
    $region16: #{tpu_custom_call.1} parent=1 // pred_region
      _
    $region17: #{tpu_custom_call.1} parent=1 // pred_fallthru
      _
    // Predicated region
    $region18: #{tpu_custom_call.1} parent=1 // pred_check
      _
    $region19: #{tpu_custom_call.1} parent=1 // pred_check_branch
      %31 = sbr.rel (0) target = $region21
    $region20: #{tpu_custom_call.1} parent=1 // pred_region
      _
    $region21: #{tpu_custom_call.1} parent=1 // pred_fallthru
      _
    // Predicated region
    $region22: #{tpu_custom_call.1} parent=1 // pred_check
      _
    $region23: #{tpu_custom_call.1} parent=1 // pred_check_branch
      %33 = sbr.rel (0) target = $region25
    $region24: #{tpu_custom_call.1} parent=1 // pred_region
      _
    $region25: #{tpu_custom_call.1} parent=1 // pred_fallthru
      _
    // Predicated region
    $region26: #{tpu_custom_call.1} parent=1 // pred_check
      _
    $region27: #{tpu_custom_call.1} parent=1 // pred_check_branch
      %35 = sbr.rel (0) target = $region29
    $region28: #{tpu_custom_call.1} parent=1 // pred_region
      _
    $region29: #{tpu_custom_call.1} parent=1 // pred_fallthru
      _
    // Predicated region
    $region30: #{tpu_custom_call.1} parent=1 // pred_check
      _
    $region31: #{tpu_custom_call.1} parent=1 // pred_check_branch
      %37 = sbr.rel (0) target = $region33
    $region32: #{tpu_custom_call.1} parent=1 // pred_region
      %s39 = ssub.s32 16, 16
      %40 = vsyncadd [#allocation3], %s39
      %s42 = sshll.u32 [#allocation2], 4
      %s43 = int_to_ptr.vmem [resolvable:$true] %s42
      %45 = dma.hbm_to_vmem [thread:$0]  %s7, 16, %s43, [#allocation3]
    $region33: #{tpu_custom_call.1} parent=1 // pred_fallthru
      _
    // Predicated region
    $region34: #{tpu_custom_call.1} parent=1 // pred_check
      _
    $region35: #{tpu_custom_call.1} parent=1 // pred_check_branch
      %47 = sbr.rel (0) target = $region37
    $region36: #{tpu_custom_call.1} parent=1 // pred_region
      %s49 = ssub.s32 16, 16
      %50 = vsyncadd [#allocation6], %s49
      %s52 = sshll.u32 [#allocation5], 4
      %s53 = int_to_ptr.vmem [resolvable:$true] %s52
      %55 = dma.hbm_to_vmem [thread:$0]  %s8, 16, %s53, [#allocation6]
    $region37: #{tpu_custom_call.1} parent=1 // pred_fallthru
      _
    // Predicated region
    $region38: #{tpu_custom_call.1} parent=1 // pred_check
      _
    $region39: #{tpu_custom_call.1} parent=1 // pred_check_branch
      %57 = sbr.rel (0) target = $region41
    $region40: #{tpu_custom_call.1} parent=1 // pred_region
      %s59 = ssub.s32 16, 16
      %60 = vsyncadd [#allocation6], %s59
      %s62 = sshll.u32 [#allocation7], 4
      %s63 = int_to_ptr.vmem [resolvable:$true] %s62
      %65 = dma.hbm_to_vmem [thread:$0]  %s9, 16, %s63, [#allocation6]
    $region41: #{tpu_custom_call.1} parent=1 // pred_fallthru
      _
    // Predicated region
    $region42: #{tpu_custom_call.1} parent=1 // pred_check
      _
    $region43: #{tpu_custom_call.1} parent=1 // pred_check_branch
      %67 = sbr.rel (0) target = $region45
    $region44: #{tpu_custom_call.1} parent=1 // pred_region
      _
    $region45: #{tpu_custom_call.1} parent=1 // pred_fallthru
      _
    // Predicated region
    $region46: #{tpu_custom_call.1} parent=1 // pred_check
      _
    $region47: #{tpu_custom_call.1} parent=1 // pred_check_branch
      %69 = sbr.rel (0) target = $region49
    $region48: #{tpu_custom_call.1} parent=1 // pred_region
      _
    $region49: #{tpu_custom_call.1} parent=1 // pred_fallthru
      _
    // Predicated region
    $region50: #{tpu_custom_call.1} parent=1 // pred_check
      _
    $region51: #{tpu_custom_call.1} parent=1 // pred_check_branch
      %71 = sbr.rel (0) target = $region53
    $region52: #{tpu_custom_call.1} parent=1 // pred_region
      _
    $region53: #{tpu_custom_call.1} parent=1 // pred_fallthru
      _
    // Predicated region
    $region54: #{tpu_custom_call.1} parent=1 // pred_check
      _
    $region55: #{tpu_custom_call.1} parent=1 // pred_check_branch
      %73 = sbr.rel (0) target = $region57
    $region56: #{tpu_custom_call.1} parent=1 // pred_region
      _
    $region57: #{tpu_custom_call.1} parent=1 // pred_fallthru
      _
    // Predicated region
    $region58: #{tpu_custom_call.1} parent=1 // pred_check
      _
    $region59: #{tpu_custom_call.1} parent=1 // pred_check_branch
      %75 = sbr.rel (0) target = $region61
    $region60: #{tpu_custom_call.1} parent=1 // pred_region
      %76 = dma.done [#allocation3], 16
    $region61: #{tpu_custom_call.1} parent=1 // pred_fallthru
      _
    // Predicated region
    $region62: #{tpu_custom_call.1} parent=1 // pred_check
      _
    $region63: #{tpu_custom_call.1} parent=1 // pred_check_branch
      %78 = sbr.rel (0) target = $region65
    $region64: #{tpu_custom_call.1} parent=1 // pred_region
      %79 = dma.done [#allocation6], 16
    $region65: #{tpu_custom_call.1} parent=1 // pred_fallthru
      _
    // Predicated region
    $region66: #{tpu_custom_call.1} parent=1 // pred_check
      _
    $region67: #{tpu_custom_call.1} parent=1 // pred_check_branch
      %81 = sbr.rel (0) target = $region69
    $region68: #{tpu_custom_call.1} parent=1 // pred_region
      %82 = dma.done [#allocation6], 16
    $region69: #{tpu_custom_call.1} parent=1 // pred_fallthru
      _
    %v84 = vld [vmem:[%s0] sm:$0xff]
    %v85 = vld [vmem:[%s0 + $0x8] sm:$0xff]
    %v86 = vld [vmem:[%s1] sm:$0x1]
    %v87 = vld [vmem:[%s2] sm:$0x1]
    %vm88 = vcmask 261120
    %v89 = vsel %vm88, %v84, 0.0
    %90 = vadd.xlane.f32.xlu0 %v89
    %v91 = vpop.xlane.xlu0 %90
    %v92 = vsel %vm88, %v85, 0.0
    %93 = vadd.xlane.f32.xlu0 %v92
    %v94 = vpop.xlane.xlu0 %93
    %v95 = vrcp.pop 32.0
    %v96 = vmul.f32 %v91, %v95
    %v97 = vmul.f32 %v94, %v95
    %v98 = vsub.f32 %v84, %v96
    %v99 = vsub.f32 %v85, %v97
    %v100 = vmul.f32 %v98, %v98
    %v101 = vmul.f32 %v99, %v99
    %v102 = vsel %vm88, %v100, 0.0
    %103 = vadd.xlane.f32.xlu0 %v102
    %v104 = vpop.xlane.xlu0 %103
    %v105 = vsel %vm88, %v101, 0.0
    %106 = vadd.xlane.f32.xlu0 %v105
    %v107 = vpop.xlane.xlu0 %106
    %v108 = vmul.f32 %v104, 0.032258064
    %v109 = vmul.f32 %v107, 0.032258064
    %v110 = vrsqrt.pop %v108
    %v111 = vmul.f32 %v108, %v110
    %vm112 = vcmp.eq.f32.partialorder %v108, inf
    %v113 = vsel %vm112, %v108, %v111
    %vm114 = vcmp.eq.f32.partialorder %v108, 0.0
    %v115 = vand.u32 %v108, 2147483648
    %v116 = vsel %vm114, %v115, %v113
    %v117 = vrsqrt.pop %v109
    %v118 = vmul.f32 %v109, %v117
    %vm119 = vcmp.eq.f32.partialorder %v109, inf
    %v120 = vsel %vm119, %v109, %v118
    %vm121 = vcmp.eq.f32.partialorder %v109, 0.0
    %v122 = vand.u32 %v109, 2147483648
    %v123 = vsel %vm121, %v122, %v120
    %v124 = vadd.f32 %v116, 1e-06
    %v125 = vadd.f32 %v123, 1e-06
    %v126 = vrcp.pop %v124
    %v127 = vrcp.pop %v125
    %v128 = vmul.f32 %v98, %v126
    %v129 = vmul.f32 %v99, %v127
    %v131 = vlaneseq
    %v132 = vshrl.u32 %v131, 7
    %v133 = vsub.s32 0, %v132
    %v134 = vrot.slane %v86, %v133
    %v136 = vmul.f32 %v134, %v128
    %v137 = vmul.f32 %v134, %v129
    %v139 = vlaneseq
    %v140 = vshrl.u32 %v139, 7
    %v141 = vsub.s32 0, %v140
    %v142 = vrot.slane %v87, %v141
    %v144 = vadd.f32 %v136, %v142
    %v145 = vadd.f32 %v137, %v142
    %v146 = vpack.c.bf16 %v145, %v144
    %v147 = vld [vmem:[%s3] sm:$0xf]
    %v148 = vld [vmem:[%s3 + $0x4] sm:$0xf]
    %v149 = vld [vmem:[%s3 + $0x8] sm:$0xf]
    %v150 = vld [vmem:[%s3 + $0xc] sm:$0xf]
    %v155 = vunpack.c.l.b16 %v147
    %v156 = vunpack.c.l.b16 %v148
    %v157 = vunpack.c.l.b16 %v149
    %v158 = vunpack.c.l.b16 %v150
    %v159 = vpack.c.b16 %v156, %v155
    %v160 = vpack.c.b16 %v158, %v157
    %v164 = vsel %vm88, %v146, 0
    %166 = vmatprep.subr.bf16.mxu0 0
    %167 = vmatpush1.bf16.msra.mxu0 %v159
    %168 = vmatprep.subr.bf16.mxu0 0
    %169 = vmatpush1.bf16.msra.mxu0 %v160
    %170 = vmatprep.subr.bf16.mxu0 0
    %171 = vmatpush1.bf16.msra.mxu0 0
    %172 = vmatprep.subr.bf16.mxu0 0
    %173 = vmatpush1.bf16.msra.mxu0 0
    %174 = vmatprep.subr.bf16.mxu0 0
    %175 = vmatpush1.bf16.msra.mxu0 0
    %176 = vmatprep.subr.bf16.mxu0 0
    %177 = vmatpush1.bf16.msra.mxu0 0
    %178 = vmatprep.subr.bf16.mxu0 0
    %179 = vmatpush1.bf16.msra.mxu0 0
    %180 = vmatprep.subr.bf16.mxu0 0
    %181 = vmatpush1.bf16.msra.mxu0 0
    %182 = vmatprep.subr.bf16.mxu0 0
    %183 = vmatpush1.bf16.msra.mxu0 0
    %184 = vmatprep.subr.bf16.mxu0 0
    %185 = vmatpush1.bf16.msra.mxu0 0
    %186 = vmatprep.subr.bf16.mxu0 0
    %187 = vmatpush1.bf16.msra.mxu0 0
    %188 = vmatprep.subr.bf16.mxu0 0
    %189 = vmatpush1.bf16.msra.mxu0 0
    %190 = vmatprep.subr.bf16.mxu0 0
    %191 = vmatpush1.bf16.msra.mxu0 0
    %192 = vmatprep.subr.bf16.mxu0 0
    %193 = vmatpush1.bf16.msra.mxu0 0
    %194 = vmatprep.subr.bf16.mxu0 0
    %195 = vmatpush1.bf16.msra.mxu0 0
    %196 = vmatprep.subr.bf16.mxu0 0
    %197 = vmatpush1.bf16.msra.mxu0 0
    %198 = vmatprep.mubr.bf16.mxu0 0
    %199 = vmatmul.mubr.bf16.gmra.mrb[0].mxu0 %v164
    %v200 = vpop.f32.mrb[0].mxu0
    %v201 = vadd.f32 0.0, %v200
    %v202 = vpop.f32.mrb[0].mxu0
    %v203 = vpop.f32.mrb[0].mxu0
    %v204 = vadd.f32 0.0, %v203
    %v205 = vpop.f32.mrb[0].mxu0
    %206 = vdwg.mxu0
    %v207 = vld [vmem:[%s4] sm:$0xf]
    %v208 = vld [vmem:[%s4 + $0x4] sm:$0xf]
    %v209 = vld [vmem:[%s4 + $0x8] sm:$0xf]
    %v210 = vld [vmem:[%s4 + $0xc] sm:$0xf]
    %v215 = vunpack.c.l.b16 %v207
    %v216 = vunpack.c.l.b16 %v208
    %v217 = vunpack.c.l.b16 %v209
    %v218 = vunpack.c.l.b16 %v210
    %v219 = vpack.c.b16 %v216, %v215
    %v220 = vpack.c.b16 %v218, %v217
    %223 = vmatprep.subr.bf16.mxu0 0
    %224 = vmatpush1.bf16.msra.mxu0 %v219
    %225 = vmatprep.subr.bf16.mxu0 0
    %226 = vmatpush1.bf16.msra.mxu0 %v220
    %227 = vmatprep.subr.bf16.mxu0 0
    %228 = vmatpush1.bf16.msra.mxu0 0
    %229 = vmatprep.subr.bf16.mxu0 0
    %230 = vmatpush1.bf16.msra.mxu0 0
    %231 = vmatprep.subr.bf16.mxu0 0
    %232 = vmatpush1.bf16.msra.mxu0 0
    %233 = vmatprep.subr.bf16.mxu0 0
    %234 = vmatpush1.bf16.msra.mxu0 0
    %235 = vmatprep.subr.bf16.mxu0 0
    %236 = vmatpush1.bf16.msra.mxu0 0
    %237 = vmatprep.subr.bf16.mxu0 0
    %238 = vmatpush1.bf16.msra.mxu0 0
    %239 = vmatprep.subr.bf16.mxu0 0
    %240 = vmatpush1.bf16.msra.mxu0 0
    %241 = vmatprep.subr.bf16.mxu0 0
    %242 = vmatpush1.bf16.msra.mxu0 0
    %243 = vmatprep.subr.bf16.mxu0 0
    %244 = vmatpush1.bf16.msra.mxu0 0
    %245 = vmatprep.subr.bf16.mxu0 0
    %246 = vmatpush1.bf16.msra.mxu0 0
    %247 = vmatprep.subr.bf16.mxu0 0
    %248 = vmatpush1.bf16.msra.mxu0 0
    %249 = vmatprep.subr.bf16.mxu0 0
    %250 = vmatpush1.bf16.msra.mxu0 0
    %251 = vmatprep.subr.bf16.mxu0 0
    %252 = vmatpush1.bf16.msra.mxu0 0
    %253 = vmatprep.subr.bf16.mxu0 0
    %254 = vmatpush1.bf16.msra.mxu0 0
    %255 = vmatprep.mubr.bf16.mxu0 0
    %256 = vmatmul.mubr.bf16.gmra.mrb[0].mxu0 %v164
    %v257 = vpop.f32.mrb[0].mxu0
    %v258 = vadd.f32 0.0, %v257
    %v259 = vpop.f32.mrb[0].mxu0
    %v260 = vpop.f32.mrb[0].mxu0
    %v261 = vadd.f32 0.0, %v260
    %v262 = vpop.f32.mrb[0].mxu0
    %263 = vdwg.mxu0
    %v264 = vld [vmem:[%s5] sm:$0xf]
    %v265 = vld [vmem:[%s5 + $0x4] sm:$0xf]
    %v266 = vld [vmem:[%s5 + $0x8] sm:$0xf]
    %v267 = vld [vmem:[%s5 + $0xc] sm:$0xf]
    %v272 = vunpack.c.l.b16 %v264
    %v273 = vunpack.c.l.b16 %v265
    %v274 = vunpack.c.l.b16 %v266
    %v275 = vunpack.c.l.b16 %v267
    %v276 = vpack.c.b16 %v273, %v272
    %v277 = vpack.c.b16 %v275, %v274
    %280 = vmatprep.subr.bf16.mxu0 0
    %281 = vmatpush1.bf16.msra.mxu0 %v276
    %282 = vmatprep.subr.bf16.mxu0 0
    %283 = vmatpush1.bf16.msra.mxu0 %v277
    %284 = vmatprep.subr.bf16.mxu0 0
    %285 = vmatpush1.bf16.msra.mxu0 0
    %286 = vmatprep.subr.bf16.mxu0 0
    %287 = vmatpush1.bf16.msra.mxu0 0
    %288 = vmatprep.subr.bf16.mxu0 0
    %289 = vmatpush1.bf16.msra.mxu0 0
    %290 = vmatprep.subr.bf16.mxu0 0
    %291 = vmatpush1.bf16.msra.mxu0 0
    %292 = vmatprep.subr.bf16.mxu0 0
    %293 = vmatpush1.bf16.msra.mxu0 0
    %294 = vmatprep.subr.bf16.mxu0 0
    %295 = vmatpush1.bf16.msra.mxu0 0
    %296 = vmatprep.subr.bf16.mxu0 0
    %297 = vmatpush1.bf16.msra.mxu0 0
    %298 = vmatprep.subr.bf16.mxu0 0
    %299 = vmatpush1.bf16.msra.mxu0 0
    %300 = vmatprep.subr.bf16.mxu0 0
    %301 = vmatpush1.bf16.msra.mxu0 0
    %302 = vmatprep.subr.bf16.mxu0 0
    %303 = vmatpush1.bf16.msra.mxu0 0
    %304 = vmatprep.subr.bf16.mxu0 0
    %305 = vmatpush1.bf16.msra.mxu0 0
    %306 = vmatprep.subr.bf16.mxu0 0
    %307 = vmatpush1.bf16.msra.mxu0 0
    %308 = vmatprep.subr.bf16.mxu0 0
    %309 = vmatpush1.bf16.msra.mxu0 0
    %310 = vmatprep.subr.bf16.mxu0 0
    %311 = vmatpush1.bf16.msra.mxu0 0
    %312 = vmatprep.mubr.bf16.mxu0 0
    %313 = vmatmul.mubr.bf16.gmra.mrb[0].mxu0 %v164
    %v314 = vpop.f32.mrb[0].mxu0
    %v315 = vadd.f32 0.0, %v314
    %v316 = vpop.f32.mrb[0].mxu0
    %v317 = vpop.f32.mrb[0].mxu0
    %v318 = vadd.f32 0.0, %v317
    %v319 = vpop.f32.mrb[0].mxu0
    %320 = vdwg.mxu0
    %v321 = vpack.c.bf16 %v201, %v201
    %v322 = vpack.c.bf16 %v204, %v204
    %v323 = vpack.c.bf16 %v258, %v258
    %v324 = vpack.c.bf16 %v261, %v261
    %v325 = vpack.c.bf16 %v315, %v315
    %v326 = vpack.c.bf16 %v318, %v318
    %v327 = vlaneseq
    %v328 = vshrl.u32 %v327, 7
    %v329 = vlaneseq
    %v330 = vand.u32 %v329, 127
    %vm331 = vcmp.ge.s32.totalorder %v328, %v330
    %vm332 = vcmask 64512
    %v334 = vsel %vm332, %v321, 0
    %v337 = vsel %vm332, %v323, 0
    %339 = vmatprep.subr.bf16.mxu0 0
    %340 = vmatpush1.bf16.xpose.msra.mxu0 %v337
    %341 = vmatprep.subr.bf16.mxu0 0
    %342 = vmatpush1.bf16.xpose.msra.mxu0 0
    %343 = vmatprep.subr.bf16.mxu0 0
    %344 = vmatpush1.bf16.xpose.msra.mxu0 0
    %345 = vmatprep.subr.bf16.mxu0 0
    %346 = vmatpush1.bf16.xpose.msra.mxu0 0
    %347 = vmatprep.subr.bf16.mxu0 0
    %348 = vmatpush1.bf16.xpose.msra.mxu0 0
    %349 = vmatprep.subr.bf16.mxu0 0
    %350 = vmatpush1.bf16.xpose.msra.mxu0 0
    %351 = vmatprep.subr.bf16.mxu0 0
    %352 = vmatpush1.bf16.xpose.msra.mxu0 0
    %353 = vmatprep.subr.bf16.mxu0 0
    %354 = vmatpush1.bf16.xpose.msra.mxu0 0
    %355 = vmatprep.subr.bf16.mxu0 0
    %356 = vmatpush1.bf16.xpose.msra.mxu0 0
    %357 = vmatprep.subr.bf16.mxu0 0
    %358 = vmatpush1.bf16.xpose.msra.mxu0 0
    %359 = vmatprep.subr.bf16.mxu0 0
    %360 = vmatpush1.bf16.xpose.msra.mxu0 0
    %361 = vmatprep.subr.bf16.mxu0 0
    %362 = vmatpush1.bf16.xpose.msra.mxu0 0
    %363 = vmatprep.subr.bf16.mxu0 0
    %364 = vmatpush1.bf16.xpose.msra.mxu0 0
    %365 = vmatprep.subr.bf16.mxu0 0
    %366 = vmatpush1.bf16.xpose.msra.mxu0 0
    %367 = vmatprep.subr.bf16.mxu0 0
    %368 = vmatpush1.bf16.xpose.msra.mxu0 0
    %369 = vmatprep.subr.bf16.mxu0 0
    %370 = vmatpush1.bf16.xpose.msra.mxu0 0
    %371 = vmatprep.mubr.bf16.mxu0 0
    %372 = vmatmul.mubr.bf16.gmra.mrb[0].mxu0 %v334
    %v373 = vpop.f32.mrb[0].mxu0
    %v374 = vadd.f32 0.0, %v373
    %v375 = vpop.f32.mrb[0].mxu0
    %v376 = vpop.f32.mrb[0].mxu0
    %v377 = vpop.f32.mrb[0].mxu0
    %378 = vdwg.mxu0
    %v380 = vsel %vm332, %v322, 0
    %v383 = vsel %vm332, %v324, 0
    %385 = vmatprep.subr.bf16.mxu0 0
    %386 = vmatpush1.bf16.xpose.msra.mxu0 %v383
    %387 = vmatprep.subr.bf16.mxu0 0
    %388 = vmatpush1.bf16.xpose.msra.mxu0 0
    %389 = vmatprep.subr.bf16.mxu0 0
    %390 = vmatpush1.bf16.xpose.msra.mxu0 0
    %391 = vmatprep.subr.bf16.mxu0 0
    %392 = vmatpush1.bf16.xpose.msra.mxu0 0
    %393 = vmatprep.subr.bf16.mxu0 0
    %394 = vmatpush1.bf16.xpose.msra.mxu0 0
    %395 = vmatprep.subr.bf16.mxu0 0
    %396 = vmatpush1.bf16.xpose.msra.mxu0 0
    %397 = vmatprep.subr.bf16.mxu0 0
    %398 = vmatpush1.bf16.xpose.msra.mxu0 0
    %399 = vmatprep.subr.bf16.mxu0 0
    %400 = vmatpush1.bf16.xpose.msra.mxu0 0
    %401 = vmatprep.subr.bf16.mxu0 0
    %402 = vmatpush1.bf16.xpose.msra.mxu0 0
    %403 = vmatprep.subr.bf16.mxu0 0
    %404 = vmatpush1.bf16.xpose.msra.mxu0 0
    %405 = vmatprep.subr.bf16.mxu0 0
    %406 = vmatpush1.bf16.xpose.msra.mxu0 0
    %407 = vmatprep.subr.bf16.mxu0 0
    %408 = vmatpush1.bf16.xpose.msra.mxu0 0
    %409 = vmatprep.subr.bf16.mxu0 0
    %410 = vmatpush1.bf16.xpose.msra.mxu0 0
    %411 = vmatprep.subr.bf16.mxu0 0
    %412 = vmatpush1.bf16.xpose.msra.mxu0 0
    %413 = vmatprep.subr.bf16.mxu0 0
    %414 = vmatpush1.bf16.xpose.msra.mxu0 0
    %415 = vmatprep.subr.bf16.mxu0 0
    %416 = vmatpush1.bf16.xpose.msra.mxu0 0
    %417 = vmatprep.mubr.bf16.mxu0 0
    %418 = vmatmul.mubr.bf16.gmra.mrb[0].mxu0 %v380
    %v419 = vpop.f32.mrb[0].mxu0
    %v420 = vadd.f32 0.0, %v419
    %v421 = vpop.f32.mrb[0].mxu0
    %v422 = vpop.f32.mrb[0].mxu0
    %v423 = vpop.f32.mrb[0].mxu0
    %424 = vdwg.mxu0
    %v425 = vmul.f32 %v374, 0.35355338
    %v426 = vmul.f32 %v420, 0.35355338
    %v427 = vsel %vm331, 1, 0
    %vm428 = vcmp.eq.s32.totalorder %v427, 1
    %v429 = vsel %vm428, %v425, -1e+30
    %v430 = vsel %vm428, %v426, -1e+30
    %v431 = vsel %vm332, %v429, -inf
    %432 = vmax.xlane.f32.xlu0 %v431
    %v433 = vpop.xlane.xlu0 %432
    %v434 = vsel %vm332, %v430, -inf
    %435 = vmax.xlane.f32.xlu0 %v434
    %v436 = vpop.xlane.xlu0 %435
    %v437 = vsub.f32 %v429, %v433
    %v438 = vsub.f32 %v430, %v436
    %v439 = vmul.f32 %v437, 1.442695
    %v440 = vpow.pop %v439
    %v441 = vmul.f32 %v438, 1.442695
    %v442 = vpow.pop %v441
    %v443 = vsel %vm332, %v440, 0.0
    %444 = vadd.xlane.f32.xlu0 %v443
    %v445 = vpop.xlane.xlu0 %444
    %v446 = vsel %vm332, %v442, 0.0
    %447 = vadd.xlane.f32.xlu0 %v446
    %v448 = vpop.xlane.xlu0 %447
    %v449 = vrcp.pop %v445
    %v450 = vrcp.pop %v448
    %v451 = vmul.f32 %v440, %v449
    %v452 = vmul.f32 %v442, %v450
    %v453 = vpack.c.bf16 %v451, %v451
    %v454 = vpack.c.bf16 %v452, %v452
    %v456 = vsel %vm332, %v453, 0
    %vm458 = vcmask 1043456
    %v460 = vsel %vm458, %v325, 0
    %462 = vmatprep.subr.bf16.mxu0 0
    %463 = vmatpush1.bf16.msra.mxu0 %v460
    %464 = vmatprep.subr.bf16.mxu0 0
    %465 = vmatpush1.bf16.msra.mxu0 0
    %466 = vmatprep.subr.bf16.mxu0 0
    %467 = vmatpush1.bf16.msra.mxu0 0
    %468 = vmatprep.subr.bf16.mxu0 0
    %469 = vmatpush1.bf16.msra.mxu0 0
    %470 = vmatprep.subr.bf16.mxu0 0
    %471 = vmatpush1.bf16.msra.mxu0 0
    %472 = vmatprep.subr.bf16.mxu0 0
    %473 = vmatpush1.bf16.msra.mxu0 0
    %474 = vmatprep.subr.bf16.mxu0 0
    %475 = vmatpush1.bf16.msra.mxu0 0
    %476 = vmatprep.subr.bf16.mxu0 0
    %477 = vmatpush1.bf16.msra.mxu0 0
    %478 = vmatprep.subr.bf16.mxu0 0
    %479 = vmatpush1.bf16.msra.mxu0 0
    %480 = vmatprep.subr.bf16.mxu0 0
    %481 = vmatpush1.bf16.msra.mxu0 0
    %482 = vmatprep.subr.bf16.mxu0 0
    %483 = vmatpush1.bf16.msra.mxu0 0
    %484 = vmatprep.subr.bf16.mxu0 0
    %485 = vmatpush1.bf16.msra.mxu0 0
    %486 = vmatprep.subr.bf16.mxu0 0
    %487 = vmatpush1.bf16.msra.mxu0 0
    %488 = vmatprep.subr.bf16.mxu0 0
    %489 = vmatpush1.bf16.msra.mxu0 0
    %490 = vmatprep.subr.bf16.mxu0 0
    %491 = vmatpush1.bf16.msra.mxu0 0
    %492 = vmatprep.subr.bf16.mxu0 0
    %493 = vmatpush1.bf16.msra.mxu0 0
    %494 = vmatprep.mubr.bf16.mxu0 0
    %495 = vmatmul.mubr.bf16.gmra.mrb[0].mxu0 %v456
    %v496 = vpop.f32.mrb[0].mxu0
    %v497 = vadd.f32 0.0, %v496
    %v498 = vpop.f32.mrb[0].mxu0
    %v499 = vpop.f32.mrb[0].mxu0
    %v500 = vpop.f32.mrb[0].mxu0
    %501 = vdwg.mxu0
    %v503 = vsel %vm332, %v454, 0
    %v506 = vsel %vm458, %v326, 0
    %508 = vmatprep.subr.bf16.mxu0 0
    %509 = vmatpush1.bf16.msra.mxu0 %v506
    %510 = vmatprep.subr.bf16.mxu0 0
    %511 = vmatpush1.bf16.msra.mxu0 0
    %512 = vmatprep.subr.bf16.mxu0 0
    %513 = vmatpush1.bf16.msra.mxu0 0
    %514 = vmatprep.subr.bf16.mxu0 0
    %515 = vmatpush1.bf16.msra.mxu0 0
    %516 = vmatprep.subr.bf16.mxu0 0
    %517 = vmatpush1.bf16.msra.mxu0 0
    %518 = vmatprep.subr.bf16.mxu0 0
    %519 = vmatpush1.bf16.msra.mxu0 0
    %520 = vmatprep.subr.bf16.mxu0 0
    %521 = vmatpush1.bf16.msra.mxu0 0
    %522 = vmatprep.subr.bf16.mxu0 0
    %523 = vmatpush1.bf16.msra.mxu0 0
    %524 = vmatprep.subr.bf16.mxu0 0
    %525 = vmatpush1.bf16.msra.mxu0 0
    %526 = vmatprep.subr.bf16.mxu0 0
    %527 = vmatpush1.bf16.msra.mxu0 0
    %528 = vmatprep.subr.bf16.mxu0 0
    %529 = vmatpush1.bf16.msra.mxu0 0
    %530 = vmatprep.subr.bf16.mxu0 0
    %531 = vmatpush1.bf16.msra.mxu0 0
    %532 = vmatprep.subr.bf16.mxu0 0
    %533 = vmatpush1.bf16.msra.mxu0 0
    %534 = vmatprep.subr.bf16.mxu0 0
    %535 = vmatpush1.bf16.msra.mxu0 0
    %536 = vmatprep.subr.bf16.mxu0 0
    %537 = vmatpush1.bf16.msra.mxu0 0
    %538 = vmatprep.subr.bf16.mxu0 0
    %539 = vmatpush1.bf16.msra.mxu0 0
    %540 = vmatprep.mubr.bf16.mxu0 0
    %541 = vmatmul.mubr.bf16.gmra.mrb[0].mxu0 %v503
    %v542 = vpop.f32.mrb[0].mxu0
    %v543 = vadd.f32 0.0, %v542
    %v544 = vpop.f32.mrb[0].mxu0
    %v545 = vpop.f32.mrb[0].mxu0
    %v546 = vpop.f32.mrb[0].mxu0
    %547 = vdwg.mxu0
    %v548 = vpack.c.bf16 %v543, %v497
    %v549 = vld [vmem:[%s6] sm:$0xf]
    %551 = vrot.lane.b32.xlu0 %v321, 120
    %v552 = vpop.permute.xlu0 %551
    %554 = vrot.lane.b32.xlu0 %v323, 120
    %v555 = vpop.permute.xlu0 %554
    %v557 = vsel %vm332, %v552, 0
    %v560 = vsel %vm332, %v555, 0
    %562 = vmatprep.subr.bf16.mxu0 0
    %563 = vmatpush1.bf16.xpose.msra.mxu0 %v560
    %564 = vmatprep.subr.bf16.mxu0 0
    %565 = vmatpush1.bf16.xpose.msra.mxu0 0
    %566 = vmatprep.subr.bf16.mxu0 0
    %567 = vmatpush1.bf16.xpose.msra.mxu0 0
    %568 = vmatprep.subr.bf16.mxu0 0
    %569 = vmatpush1.bf16.xpose.msra.mxu0 0
    %570 = vmatprep.subr.bf16.mxu0 0
    %571 = vmatpush1.bf16.xpose.msra.mxu0 0
    %572 = vmatprep.subr.bf16.mxu0 0
    %573 = vmatpush1.bf16.xpose.msra.mxu0 0
    %574 = vmatprep.subr.bf16.mxu0 0
    %575 = vmatpush1.bf16.xpose.msra.mxu0 0
    %576 = vmatprep.subr.bf16.mxu0 0
    %577 = vmatpush1.bf16.xpose.msra.mxu0 0
    %578 = vmatprep.subr.bf16.mxu0 0
    %579 = vmatpush1.bf16.xpose.msra.mxu0 0
    %580 = vmatprep.subr.bf16.mxu0 0
    %581 = vmatpush1.bf16.xpose.msra.mxu0 0
    %582 = vmatprep.subr.bf16.mxu0 0
    %583 = vmatpush1.bf16.xpose.msra.mxu0 0
    %584 = vmatprep.subr.bf16.mxu0 0
    %585 = vmatpush1.bf16.xpose.msra.mxu0 0
    %586 = vmatprep.subr.bf16.mxu0 0
    %587 = vmatpush1.bf16.xpose.msra.mxu0 0
    %588 = vmatprep.subr.bf16.mxu0 0
    %589 = vmatpush1.bf16.xpose.msra.mxu0 0
    %590 = vmatprep.subr.bf16.mxu0 0
    %591 = vmatpush1.bf16.xpose.msra.mxu0 0
    %592 = vmatprep.subr.bf16.mxu0 0
    %593 = vmatpush1.bf16.xpose.msra.mxu0 0
    %594 = vmatprep.mubr.bf16.mxu0 0
    %595 = vmatmul.mubr.bf16.gmra.mrb[0].mxu0 %v557
    %v596 = vpop.f32.mrb[0].mxu0
    %v597 = vadd.f32 0.0, %v596
    %v598 = vpop.f32.mrb[0].mxu0
    %v599 = vpop.f32.mrb[0].mxu0
    %v600 = vpop.f32.mrb[0].mxu0
    %601 = vdwg.mxu0
    %603 = vrot.lane.b32.xlu0 %v322, 120
    %v604 = vpop.permute.xlu0 %603
    %606 = vrot.lane.b32.xlu0 %v324, 120
    %v607 = vpop.permute.xlu0 %606
    %v609 = vsel %vm332, %v604, 0
    %v612 = vsel %vm332, %v607, 0
    %614 = vmatprep.subr.bf16.mxu0 0
    %615 = vmatpush1.bf16.xpose.msra.mxu0 %v612
    %616 = vmatprep.subr.bf16.mxu0 0
    %617 = vmatpush1.bf16.xpose.msra.mxu0 0
    %618 = vmatprep.subr.bf16.mxu0 0
    %619 = vmatpush1.bf16.xpose.msra.mxu0 0
    %620 = vmatprep.subr.bf16.mxu0 0
    %621 = vmatpush1.bf16.xpose.msra.mxu0 0
    %622 = vmatprep.subr.bf16.mxu0 0
    %623 = vmatpush1.bf16.xpose.msra.mxu0 0
    %624 = vmatprep.subr.bf16.mxu0 0
    %625 = vmatpush1.bf16.xpose.msra.mxu0 0
    %626 = vmatprep.subr.bf16.mxu0 0
    %627 = vmatpush1.bf16.xpose.msra.mxu0 0
    %628 = vmatprep.subr.bf16.mxu0 0
    %629 = vmatpush1.bf16.xpose.msra.mxu0 0
    %630 = vmatprep.subr.bf16.mxu0 0
    %631 = vmatpush1.bf16.xpose.msra.mxu0 0
    %632 = vmatprep.subr.bf16.mxu0 0
    %633 = vmatpush1.bf16.xpose.msra.mxu0 0
    %634 = vmatprep.subr.bf16.mxu0 0
    %635 = vmatpush1.bf16.xpose.msra.mxu0 0
    %636 = vmatprep.subr.bf16.mxu0 0
    %637 = vmatpush1.bf16.xpose.msra.mxu0 0
    %638 = vmatprep.subr.bf16.mxu0 0
    %639 = vmatpush1.bf16.xpose.msra.mxu0 0
    %640 = vmatprep.subr.bf16.mxu0 0
    %641 = vmatpush1.bf16.xpose.msra.mxu0 0
    %642 = vmatprep.subr.bf16.mxu0 0
    %643 = vmatpush1.bf16.xpose.msra.mxu0 0
    %644 = vmatprep.subr.bf16.mxu0 0
    %645 = vmatpush1.bf16.xpose.msra.mxu0 0
    %646 = vmatprep.mubr.bf16.mxu0 0
    %647 = vmatmul.mubr.bf16.gmra.mrb[0].mxu0 %v609
    %v648 = vpop.f32.mrb[0].mxu0
    %v649 = vadd.f32 0.0, %v648
    %v650 = vpop.f32.mrb[0].mxu0
    %v651 = vpop.f32.mrb[0].mxu0
    %v652 = vpop.f32.mrb[0].mxu0
    %653 = vdwg.mxu0
    %v654 = vmul.f32 %v597, 0.35355338
    %v655 = vmul.f32 %v649, 0.35355338
    %v656 = vsel %vm428, %v654, -1e+30
    %v657 = vsel %vm428, %v655, -1e+30
    %v658 = vsel %vm332, %v656, -inf
    %659 = vmax.xlane.f32.xlu0 %v658
    %v660 = vpop.xlane.xlu0 %659
    %v661 = vsel %vm332, %v657, -inf
    %662 = vmax.xlane.f32.xlu0 %v661
    %v663 = vpop.xlane.xlu0 %662
    %v664 = vsub.f32 %v656, %v660
    %v665 = vsub.f32 %v657, %v663
    %v666 = vmul.f32 %v664, 1.442695
    %v667 = vpow.pop %v666
    %v668 = vmul.f32 %v665, 1.442695
    %v669 = vpow.pop %v668
    %v670 = vsel %vm332, %v667, 0.0
    %671 = vadd.xlane.f32.xlu0 %v670
    %v672 = vpop.xlane.xlu0 %671
    %v673 = vsel %vm332, %v669, 0.0
    %674 = vadd.xlane.f32.xlu0 %v673
    %v675 = vpop.xlane.xlu0 %674
    %v676 = vrcp.pop %v672
    %v677 = vrcp.pop %v675
    %v678 = vmul.f32 %v667, %v676
    %v679 = vmul.f32 %v669, %v677
    %v680 = vpack.c.bf16 %v678, %v678
    %v681 = vpack.c.bf16 %v679, %v679
    %683 = vrot.lane.b32.xlu0 %v325, 120
    %v684 = vpop.permute.xlu0 %683
    %v686 = vsel %vm332, %v680, 0
    %v689 = vsel %vm458, %v684, 0
    %691 = vmatprep.subr.bf16.mxu0 0
    %692 = vmatpush1.bf16.msra.mxu0 %v689
    %693 = vmatprep.subr.bf16.mxu0 0
    %694 = vmatpush1.bf16.msra.mxu0 0
    %695 = vmatprep.subr.bf16.mxu0 0
    %696 = vmatpush1.bf16.msra.mxu0 0
    %697 = vmatprep.subr.bf16.mxu0 0
    %698 = vmatpush1.bf16.msra.mxu0 0
    %699 = vmatprep.subr.bf16.mxu0 0
    %700 = vmatpush1.bf16.msra.mxu0 0
    %701 = vmatprep.subr.bf16.mxu0 0
    %702 = vmatpush1.bf16.msra.mxu0 0
    %703 = vmatprep.subr.bf16.mxu0 0
    %704 = vmatpush1.bf16.msra.mxu0 0
    %705 = vmatprep.subr.bf16.mxu0 0
    %706 = vmatpush1.bf16.msra.mxu0 0
    %707 = vmatprep.subr.bf16.mxu0 0
    %708 = vmatpush1.bf16.msra.mxu0 0
    %709 = vmatprep.subr.bf16.mxu0 0
    %710 = vmatpush1.bf16.msra.mxu0 0
    %711 = vmatprep.subr.bf16.mxu0 0
    %712 = vmatpush1.bf16.msra.mxu0 0
    %713 = vmatprep.subr.bf16.mxu0 0
    %714 = vmatpush1.bf16.msra.mxu0 0
    %715 = vmatprep.subr.bf16.mxu0 0
    %716 = vmatpush1.bf16.msra.mxu0 0
    %717 = vmatprep.subr.bf16.mxu0 0
    %718 = vmatpush1.bf16.msra.mxu0 0
    %719 = vmatprep.subr.bf16.mxu0 0
    %720 = vmatpush1.bf16.msra.mxu0 0
    %721 = vmatprep.subr.bf16.mxu0 0
    %722 = vmatpush1.bf16.msra.mxu0 0
    %723 = vmatprep.mubr.bf16.mxu0 0
    %724 = vmatmul.mubr.bf16.gmra.mrb[0].mxu0 %v686
    %v725 = vpop.f32.mrb[0].mxu0
    %v726 = vadd.f32 0.0, %v725
    %v727 = vpop.f32.mrb[0].mxu0
    %v728 = vpop.f32.mrb[0].mxu0
    %v729 = vpop.f32.mrb[0].mxu0
    %730 = vdwg.mxu0
    %732 = vrot.lane.b32.xlu0 %v326, 120
    %v733 = vpop.permute.xlu0 %732
    %v735 = vsel %vm332, %v681, 0
    %v738 = vsel %vm458, %v733, 0
    %740 = vmatprep.subr.bf16.mxu0 0
    %741 = vmatpush1.bf16.msra.mxu0 %v738
    %742 = vmatprep.subr.bf16.mxu0 0
    %743 = vmatpush1.bf16.msra.mxu0 0
    %744 = vmatprep.subr.bf16.mxu0 0
    %745 = vmatpush1.bf16.msra.mxu0 0
    %746 = vmatprep.subr.bf16.mxu0 0
    %747 = vmatpush1.bf16.msra.mxu0 0
    %748 = vmatprep.subr.bf16.mxu0 0
    %749 = vmatpush1.bf16.msra.mxu0 0
    %750 = vmatprep.subr.bf16.mxu0 0
    %751 = vmatpush1.bf16.msra.mxu0 0
    %752 = vmatprep.subr.bf16.mxu0 0
    %753 = vmatpush1.bf16.msra.mxu0 0
    %754 = vmatprep.subr.bf16.mxu0 0
    %755 = vmatpush1.bf16.msra.mxu0 0
    %756 = vmatprep.subr.bf16.mxu0 0
    %757 = vmatpush1.bf16.msra.mxu0 0
    %758 = vmatprep.subr.bf16.mxu0 0
    %759 = vmatpush1.bf16.msra.mxu0 0
    %760 = vmatprep.subr.bf16.mxu0 0
    %761 = vmatpush1.bf16.msra.mxu0 0
    %762 = vmatprep.subr.bf16.mxu0 0
    %763 = vmatpush1.bf16.msra.mxu0 0
    %764 = vmatprep.subr.bf16.mxu0 0
    %765 = vmatpush1.bf16.msra.mxu0 0
    %766 = vmatprep.subr.bf16.mxu0 0
    %767 = vmatpush1.bf16.msra.mxu0 0
    %768 = vmatprep.subr.bf16.mxu0 0
    %769 = vmatpush1.bf16.msra.mxu0 0
    %770 = vmatprep.subr.bf16.mxu0 0
    %771 = vmatpush1.bf16.msra.mxu0 0
    %772 = vmatprep.mubr.bf16.mxu0 0
    %773 = vmatmul.mubr.bf16.gmra.mrb[0].mxu0 %v735
    %v774 = vpop.f32.mrb[0].mxu0
    %v775 = vadd.f32 0.0, %v774
    %v776 = vpop.f32.mrb[0].mxu0
    %v777 = vpop.f32.mrb[0].mxu0
    %v778 = vpop.f32.mrb[0].mxu0
    %779 = vdwg.mxu0
    %v780 = vpack.c.bf16 %v775, %v726
    %v781 = vld [vmem:[%s6 + $0x4] sm:$0xf]
    %v783 = vsel %vm332, %v780, 0
    %v786 = vsel %vm458, %v781, 0
    %788 = vmatprep.subr.bf16.mxu0 0
    %789 = vmatpush1.bf16.msra.mxu0 %v786
    %790 = vmatprep.subr.bf16.mxu0 0
    %791 = vmatpush1.bf16.msra.mxu0 0
    %792 = vmatprep.subr.bf16.mxu0 0
    %793 = vmatpush1.bf16.msra.mxu0 0
    %794 = vmatprep.subr.bf16.mxu0 0
    %795 = vmatpush1.bf16.msra.mxu0 0
    %796 = vmatprep.subr.bf16.mxu0 0
    %797 = vmatpush1.bf16.msra.mxu0 0
    %798 = vmatprep.subr.bf16.mxu0 0
    %799 = vmatpush1.bf16.msra.mxu0 0
    %800 = vmatprep.subr.bf16.mxu0 0
    %801 = vmatpush1.bf16.msra.mxu0 0
    %802 = vmatprep.subr.bf16.mxu0 0
    %803 = vmatpush1.bf16.msra.mxu0 0
    %804 = vmatprep.subr.bf16.mxu0 0
    %805 = vmatpush1.bf16.msra.mxu0 0
    %806 = vmatprep.subr.bf16.mxu0 0
    %807 = vmatpush1.bf16.msra.mxu0 0
    %808 = vmatprep.subr.bf16.mxu0 0
    %809 = vmatpush1.bf16.msra.mxu0 0
    %810 = vmatprep.subr.bf16.mxu0 0
    %811 = vmatpush1.bf16.msra.mxu0 0
    %812 = vmatprep.subr.bf16.mxu0 0
    %813 = vmatpush1.bf16.msra.mxu0 0
    %814 = vmatprep.subr.bf16.mxu0 0
    %815 = vmatpush1.bf16.msra.mxu0 0
    %816 = vmatprep.subr.bf16.mxu0 0
    %817 = vmatpush1.bf16.msra.mxu0 0
    %818 = vmatprep.subr.bf16.mxu0 0
    %819 = vmatpush1.bf16.msra.mxu0 0
    %820 = vmatprep.mubr.bf16.mxu0 0
    %821 = vmatmul.mubr.bf16.gmra.mrb[0].mxu0 %v783
    %v822 = vpop.f32.mrb[0].mxu0
    %v823 = vadd.f32 0.0, %v822
    %v824 = vpop.f32.mrb[0].mxu0
    %v825 = vpop.f32.mrb[0].mxu0
    %v826 = vadd.f32 0.0, %v825
    %v827 = vpop.f32.mrb[0].mxu0
    %828 = vdwg.mxu0
    %v830 = vsel %vm332, %v548, 0
    %v833 = vsel %vm458, %v549, 0
    %835 = vmatprep.subr.bf16.mxu0 0
    %836 = vmatpush1.bf16.msra.mxu0 %v833
    %837 = vmatprep.subr.bf16.mxu0 0
    %838 = vmatpush1.bf16.msra.mxu0 0
    %839 = vmatprep.subr.bf16.mxu0 0
    %840 = vmatpush1.bf16.msra.mxu0 0
    %841 = vmatprep.subr.bf16.mxu0 0
    %842 = vmatpush1.bf16.msra.mxu0 0
    %843 = vmatprep.subr.bf16.mxu0 0
    %844 = vmatpush1.bf16.msra.mxu0 0
    %845 = vmatprep.subr.bf16.mxu0 0
    %846 = vmatpush1.bf16.msra.mxu0 0
    %847 = vmatprep.subr.bf16.mxu0 0
    %848 = vmatpush1.bf16.msra.mxu0 0
    %849 = vmatprep.subr.bf16.mxu0 0
    %850 = vmatpush1.bf16.msra.mxu0 0
    %851 = vmatprep.subr.bf16.mxu0 0
    %852 = vmatpush1.bf16.msra.mxu0 0
    %853 = vmatprep.subr.bf16.mxu0 0
    %854 = vmatpush1.bf16.msra.mxu0 0
    %855 = vmatprep.subr.bf16.mxu0 0
    %856 = vmatpush1.bf16.msra.mxu0 0
    %857 = vmatprep.subr.bf16.mxu0 0
    %858 = vmatpush1.bf16.msra.mxu0 0
    %859 = vmatprep.subr.bf16.mxu0 0
    %860 = vmatpush1.bf16.msra.mxu0 0
    %861 = vmatprep.subr.bf16.mxu0 0
    %862 = vmatpush1.bf16.msra.mxu0 0
    %863 = vmatprep.subr.bf16.mxu0 0
    %864 = vmatpush1.bf16.msra.mxu0 0
    %865 = vmatprep.subr.bf16.mxu0 0
    %866 = vmatpush1.bf16.msra.mxu0 0
    %867 = vmatprep.mubr.bf16.mxu0 0
    %868 = vmatmul.mubr.bf16.gmra.mrb[0].mxu0 %v830
    %v869 = vpop.f32.mrb[0].mxu0
    %v870 = vadd.f32 %v823, %v869
    %v871 = vpop.f32.mrb[0].mxu0
    %v872 = vpop.f32.mrb[0].mxu0
    %v873 = vadd.f32 %v826, %v872
    %v874 = vpop.f32.mrb[0].mxu0
    %875 = vdwg.mxu0
    %876 = vrot.lane.b32.xlu0 %v321, 112
    %v877 = vpop.permute.xlu0 %876
    %878 = vrot.lane.b32.xlu0 %v323, 112
    %v879 = vpop.permute.xlu0 %878
    %v881 = vsel %vm332, %v877, 0
    %v884 = vsel %vm332, %v879, 0
    %886 = vmatprep.subr.bf16.mxu0 0
    %887 = vmatpush1.bf16.xpose.msra.mxu0 %v884
    %888 = vmatprep.subr.bf16.mxu0 0
    %889 = vmatpush1.bf16.xpose.msra.mxu0 0
    %890 = vmatprep.subr.bf16.mxu0 0
    %891 = vmatpush1.bf16.xpose.msra.mxu0 0
    %892 = vmatprep.subr.bf16.mxu0 0
    %893 = vmatpush1.bf16.xpose.msra.mxu0 0
    %894 = vmatprep.subr.bf16.mxu0 0
    %895 = vmatpush1.bf16.xpose.msra.mxu0 0
    %896 = vmatprep.subr.bf16.mxu0 0
    %897 = vmatpush1.bf16.xpose.msra.mxu0 0
    %898 = vmatprep.subr.bf16.mxu0 0
    %899 = vmatpush1.bf16.xpose.msra.mxu0 0
    %900 = vmatprep.subr.bf16.mxu0 0
    %901 = vmatpush1.bf16.xpose.msra.mxu0 0
    %902 = vmatprep.subr.bf16.mxu0 0
    %903 = vmatpush1.bf16.xpose.msra.mxu0 0
    %904 = vmatprep.subr.bf16.mxu0 0
    %905 = vmatpush1.bf16.xpose.msra.mxu0 0
    %906 = vmatprep.subr.bf16.mxu0 0
    %907 = vmatpush1.bf16.xpose.msra.mxu0 0
    %908 = vmatprep.subr.bf16.mxu0 0
    %909 = vmatpush1.bf16.xpose.msra.mxu0 0
    %910 = vmatprep.subr.bf16.mxu0 0
    %911 = vmatpush1.bf16.xpose.msra.mxu0 0
    %912 = vmatprep.subr.bf16.mxu0 0
    %913 = vmatpush1.bf16.xpose.msra.mxu0 0
    %914 = vmatprep.subr.bf16.mxu0 0
    %915 = vmatpush1.bf16.xpose.msra.mxu0 0
    %916 = vmatprep.subr.bf16.mxu0 0
    %917 = vmatpush1.bf16.xpose.msra.mxu0 0
    %918 = vmatprep.mubr.bf16.mxu0 0
    %919 = vmatmul.mubr.bf16.gmra.mrb[0].mxu0 %v881
    %v920 = vpop.f32.mrb[0].mxu0
    %v921 = vadd.f32 0.0, %v920
    %v922 = vpop.f32.mrb[0].mxu0
    %v923 = vpop.f32.mrb[0].mxu0
    %v924 = vpop.f32.mrb[0].mxu0
    %925 = vdwg.mxu0
    %926 = vrot.lane.b32.xlu0 %v322, 112
    %v927 = vpop.permute.xlu0 %926
    %928 = vrot.lane.b32.xlu0 %v324, 112
    %v929 = vpop.permute.xlu0 %928
    %v931 = vsel %vm332, %v927, 0
    %v934 = vsel %vm332, %v929, 0
    %936 = vmatprep.subr.bf16.mxu0 0
    %937 = vmatpush1.bf16.xpose.msra.mxu0 %v934
    %938 = vmatprep.subr.bf16.mxu0 0
    %939 = vmatpush1.bf16.xpose.msra.mxu0 0
    %940 = vmatprep.subr.bf16.mxu0 0
    %941 = vmatpush1.bf16.xpose.msra.mxu0 0
    %942 = vmatprep.subr.bf16.mxu0 0
    %943 = vmatpush1.bf16.xpose.msra.mxu0 0
    %944 = vmatprep.subr.bf16.mxu0 0
    %945 = vmatpush1.bf16.xpose.msra.mxu0 0
    %946 = vmatprep.subr.bf16.mxu0 0
    %947 = vmatpush1.bf16.xpose.msra.mxu0 0
    %948 = vmatprep.subr.bf16.mxu0 0
    %949 = vmatpush1.bf16.xpose.msra.mxu0 0
    %950 = vmatprep.subr.bf16.mxu0 0
    %951 = vmatpush1.bf16.xpose.msra.mxu0 0
    %952 = vmatprep.subr.bf16.mxu0 0
    %953 = vmatpush1.bf16.xpose.msra.mxu0 0
    %954 = vmatprep.subr.bf16.mxu0 0
    %955 = vmatpush1.bf16.xpose.msra.mxu0 0
    %956 = vmatprep.subr.bf16.mxu0 0
    %957 = vmatpush1.bf16.xpose.msra.mxu0 0
    %958 = vmatprep.subr.bf16.mxu0 0
    %959 = vmatpush1.bf16.xpose.msra.mxu0 0
    %960 = vmatprep.subr.bf16.mxu0 0
    %961 = vmatpush1.bf16.xpose.msra.mxu0 0
    %962 = vmatprep.subr.bf16.mxu0 0
    %963 = vmatpush1.bf16.xpose.msra.mxu0 0
    %964 = vmatprep.subr.bf16.mxu0 0
    %965 = vmatpush1.bf16.xpose.msra.mxu0 0
    %966 = vmatprep.subr.bf16.mxu0 0
    %967 = vmatpush1.bf16.xpose.msra.mxu0 0
    %968 = vmatprep.mubr.bf16.mxu0 0
    %969 = vmatmul.mubr.bf16.gmra.mrb[0].mxu0 %v931
    %v970 = vpop.f32.mrb[0].mxu0
    %v971 = vadd.f32 0.0, %v970
    %v972 = vpop.f32.mrb[0].mxu0
    %v973 = vpop.f32.mrb[0].mxu0
    %v974 = vpop.f32.mrb[0].mxu0
    %975 = vdwg.mxu0
    %v976 = vmul.f32 %v921, 0.35355338
    %v977 = vmul.f32 %v971, 0.35355338
    %v978 = vsel %vm428, %v976, -1e+30
    %v979 = vsel %vm428, %v977, -1e+30
    %v980 = vsel %vm332, %v978, -inf
    %981 = vmax.xlane.f32.xlu0 %v980
    %v982 = vpop.xlane.xlu0 %981
    %v983 = vsel %vm332, %v979, -inf
    %984 = vmax.xlane.f32.xlu0 %v983
    %v985 = vpop.xlane.xlu0 %984
    %v986 = vsub.f32 %v978, %v982
    %v987 = vsub.f32 %v979, %v985
    %v988 = vmul.f32 %v986, 1.442695
    %v989 = vpow.pop %v988
    %v990 = vmul.f32 %v987, 1.442695
    %v991 = vpow.pop %v990
    %v992 = vsel %vm332, %v989, 0.0
    %993 = vadd.xlane.f32.xlu0 %v992
    %v994 = vpop.xlane.xlu0 %993
    %v995 = vsel %vm332, %v991, 0.0
    %996 = vadd.xlane.f32.xlu0 %v995
    %v997 = vpop.xlane.xlu0 %996
    %v998 = vrcp.pop %v994
    %v999 = vrcp.pop %v997
    %v1000 = vmul.f32 %v989, %v998
    %v1001 = vmul.f32 %v991, %v999
    %v1002 = vpack.c.bf16 %v1000, %v1000
    %v1003 = vpack.c.bf16 %v1001, %v1001
    %1004 = vrot.lane.b32.xlu0 %v325, 112
    %v1005 = vpop.permute.xlu0 %1004
    %v1007 = vsel %vm332, %v1002, 0
    %v1010 = vsel %vm458, %v1005, 0
    %1012 = vmatprep.subr.bf16.mxu0 0
    %1013 = vmatpush1.bf16.msra.mxu0 %v1010
    %1014 = vmatprep.subr.bf16.mxu0 0
    %1015 = vmatpush1.bf16.msra.mxu0 0
    %1016 = vmatprep.subr.bf16.mxu0 0
    %1017 = vmatpush1.bf16.msra.mxu0 0
    %1018 = vmatprep.subr.bf16.mxu0 0
    %1019 = vmatpush1.bf16.msra.mxu0 0
    %1020 = vmatprep.subr.bf16.mxu0 0
    %1021 = vmatpush1.bf16.msra.mxu0 0
    %1022 = vmatprep.subr.bf16.mxu0 0
    %1023 = vmatpush1.bf16.msra.mxu0 0
    %1024 = vmatprep.subr.bf16.mxu0 0
    %1025 = vmatpush1.bf16.msra.mxu0 0
    %1026 = vmatprep.subr.bf16.mxu0 0
    %1027 = vmatpush1.bf16.msra.mxu0 0
    %1028 = vmatprep.subr.bf16.mxu0 0
    %1029 = vmatpush1.bf16.msra.mxu0 0
    %1030 = vmatprep.subr.bf16.mxu0 0
    %1031 = vmatpush1.bf16.msra.mxu0 0
    %1032 = vmatprep.subr.bf16.mxu0 0
    %1033 = vmatpush1.bf16.msra.mxu0 0
    %1034 = vmatprep.subr.bf16.mxu0 0
    %1035 = vmatpush1.bf16.msra.mxu0 0
    %1036 = vmatprep.subr.bf16.mxu0 0
    %1037 = vmatpush1.bf16.msra.mxu0 0
    %1038 = vmatprep.subr.bf16.mxu0 0
    %1039 = vmatpush1.bf16.msra.mxu0 0
    %1040 = vmatprep.subr.bf16.mxu0 0
    %1041 = vmatpush1.bf16.msra.mxu0 0
    %1042 = vmatprep.subr.bf16.mxu0 0
    %1043 = vmatpush1.bf16.msra.mxu0 0
    %1044 = vmatprep.mubr.bf16.mxu0 0
    %1045 = vmatmul.mubr.bf16.gmra.mrb[0].mxu0 %v1007
    %v1046 = vpop.f32.mrb[0].mxu0
    %v1047 = vadd.f32 0.0, %v1046
    %v1048 = vpop.f32.mrb[0].mxu0
    %v1049 = vpop.f32.mrb[0].mxu0
    %v1050 = vpop.f32.mrb[0].mxu0
    %1051 = vdwg.mxu0
    %1052 = vrot.lane.b32.xlu0 %v326, 112
    %v1053 = vpop.permute.xlu0 %1052
    %v1055 = vsel %vm332, %v1003, 0
    %v1058 = vsel %vm458, %v1053, 0
    %1060 = vmatprep.subr.bf16.mxu0 0
    %1061 = vmatpush1.bf16.msra.mxu0 %v1058
    %1062 = vmatprep.subr.bf16.mxu0 0
    %1063 = vmatpush1.bf16.msra.mxu0 0
    %1064 = vmatprep.subr.bf16.mxu0 0
    %1065 = vmatpush1.bf16.msra.mxu0 0
    %1066 = vmatprep.subr.bf16.mxu0 0
    %1067 = vmatpush1.bf16.msra.mxu0 0
    %1068 = vmatprep.subr.bf16.mxu0 0
    %1069 = vmatpush1.bf16.msra.mxu0 0
    %1070 = vmatprep.subr.bf16.mxu0 0
    %1071 = vmatpush1.bf16.msra.mxu0 0
    %1072 = vmatprep.subr.bf16.mxu0 0
    %1073 = vmatpush1.bf16.msra.mxu0 0
    %1074 = vmatprep.subr.bf16.mxu0 0
    %1075 = vmatpush1.bf16.msra.mxu0 0
    %1076 = vmatprep.subr.bf16.mxu0 0
    %1077 = vmatpush1.bf16.msra.mxu0 0
    %1078 = vmatprep.subr.bf16.mxu0 0
    %1079 = vmatpush1.bf16.msra.mxu0 0
    %1080 = vmatprep.subr.bf16.mxu0 0
    %1081 = vmatpush1.bf16.msra.mxu0 0
    %1082 = vmatprep.subr.bf16.mxu0 0
    %1083 = vmatpush1.bf16.msra.mxu0 0
    %1084 = vmatprep.subr.bf16.mxu0 0
    %1085 = vmatpush1.bf16.msra.mxu0 0
    %1086 = vmatprep.subr.bf16.mxu0 0
    %1087 = vmatpush1.bf16.msra.mxu0 0
    %1088 = vmatprep.subr.bf16.mxu0 0
    %1089 = vmatpush1.bf16.msra.mxu0 0
    %1090 = vmatprep.subr.bf16.mxu0 0
    %1091 = vmatpush1.bf16.msra.mxu0 0
    %1092 = vmatprep.mubr.bf16.mxu0 0
    %1093 = vmatmul.mubr.bf16.gmra.mrb[0].mxu0 %v1055
    %v1094 = vpop.f32.mrb[0].mxu0
    %v1095 = vadd.f32 0.0, %v1094
    %v1096 = vpop.f32.mrb[0].mxu0
    %v1097 = vpop.f32.mrb[0].mxu0
    %v1098 = vpop.f32.mrb[0].mxu0
    %1099 = vdwg.mxu0
    %v1100 = vpack.c.bf16 %v1095, %v1047
    %v1101 = vld [vmem:[%s6 + $0x8] sm:$0xf]
    %v1103 = vsel %vm332, %v1100, 0
    %v1106 = vsel %vm458, %v1101, 0
    %1108 = vmatprep.subr.bf16.mxu0 0
    %1109 = vmatpush1.bf16.msra.mxu0 %v1106
    %1110 = vmatprep.subr.bf16.mxu0 0
    %1111 = vmatpush1.bf16.msra.mxu0 0
    %1112 = vmatprep.subr.bf16.mxu0 0
    %1113 = vmatpush1.bf16.msra.mxu0 0
    %1114 = vmatprep.subr.bf16.mxu0 0
    %1115 = vmatpush1.bf16.msra.mxu0 0
    %1116 = vmatprep.subr.bf16.mxu0 0
    %1117 = vmatpush1.bf16.msra.mxu0 0
    %1118 = vmatprep.subr.bf16.mxu0 0
    %1119 = vmatpush1.bf16.msra.mxu0 0
    %1120 = vmatprep.subr.bf16.mxu0 0
    %1121 = vmatpush1.bf16.msra.mxu0 0
    %1122 = vmatprep.subr.bf16.mxu0 0
    %1123 = vmatpush1.bf16.msra.mxu0 0
    %1124 = vmatprep.subr.bf16.mxu0 0
    %1125 = vmatpush1.bf16.msra.mxu0 0
    %1126 = vmatprep.subr.bf16.mxu0 0
    %1127 = vmatpush1.bf16.msra.mxu0 0
    %1128 = vmatprep.subr.bf16.mxu0 0
    %1129 = vmatpush1.bf16.msra.mxu0 0
    %1130 = vmatprep.subr.bf16.mxu0 0
    %1131 = vmatpush1.bf16.msra.mxu0 0
    %1132 = vmatprep.subr.bf16.mxu0 0
    %1133 = vmatpush1.bf16.msra.mxu0 0
    %1134 = vmatprep.subr.bf16.mxu0 0
    %1135 = vmatpush1.bf16.msra.mxu0 0
    %1136 = vmatprep.subr.bf16.mxu0 0
    %1137 = vmatpush1.bf16.msra.mxu0 0
    %1138 = vmatprep.subr.bf16.mxu0 0
    %1139 = vmatpush1.bf16.msra.mxu0 0
    %1140 = vmatprep.mubr.bf16.mxu0 0
    %1141 = vmatmul.mubr.bf16.gmra.mrb[0].mxu0 %v1103
    %v1142 = vpop.f32.mrb[0].mxu0
    %v1143 = vadd.f32 0.0, %v1142
    %v1144 = vpop.f32.mrb[0].mxu0
    %v1145 = vpop.f32.mrb[0].mxu0
    %v1146 = vadd.f32 0.0, %v1145
    %v1147 = vpop.f32.mrb[0].mxu0
    %1148 = vdwg.mxu0
    %v1149 = vadd.f32 %v870, %v1143
    %v1150 = vadd.f32 %v873, %v1146
    %1151 = vrot.lane.b32.xlu0 %v321, 104
    %v1152 = vpop.permute.xlu0 %1151
    %1153 = vrot.lane.b32.xlu0 %v323, 104
    %v1154 = vpop.permute.xlu0 %1153
    %v1156 = vsel %vm332, %v1152, 0
    %v1159 = vsel %vm332, %v1154, 0
    %1161 = vmatprep.subr.bf16.mxu0 0
    %1162 = vmatpush1.bf16.xpose.msra.mxu0 %v1159
    %1163 = vmatprep.subr.bf16.mxu0 0
    %1164 = vmatpush1.bf16.xpose.msra.mxu0 0
    %1165 = vmatprep.subr.bf16.mxu0 0
    %1166 = vmatpush1.bf16.xpose.msra.mxu0 0
    %1167 = vmatprep.subr.bf16.mxu0 0
    %1168 = vmatpush1.bf16.xpose.msra.mxu0 0
    %1169 = vmatprep.subr.bf16.mxu0 0
    %1170 = vmatpush1.bf16.xpose.msra.mxu0 0
    %1171 = vmatprep.subr.bf16.mxu0 0
    %1172 = vmatpush1.bf16.xpose.msra.mxu0 0
    %1173 = vmatprep.subr.bf16.mxu0 0
    %1174 = vmatpush1.bf16.xpose.msra.mxu0 0
    %1175 = vmatprep.subr.bf16.mxu0 0
    %1176 = vmatpush1.bf16.xpose.msra.mxu0 0
    %1177 = vmatprep.subr.bf16.mxu0 0
    %1178 = vmatpush1.bf16.xpose.msra.mxu0 0
    %1179 = vmatprep.subr.bf16.mxu0 0
    %1180 = vmatpush1.bf16.xpose.msra.mxu0 0
    %1181 = vmatprep.subr.bf16.mxu0 0
    %1182 = vmatpush1.bf16.xpose.msra.mxu0 0
    %1183 = vmatprep.subr.bf16.mxu0 0
    %1184 = vmatpush1.bf16.xpose.msra.mxu0 0
    %1185 = vmatprep.subr.bf16.mxu0 0
    %1186 = vmatpush1.bf16.xpose.msra.mxu0 0
    %1187 = vmatprep.subr.bf16.mxu0 0
    %1188 = vmatpush1.bf16.xpose.msra.mxu0 0
    %1189 = vmatprep.subr.bf16.mxu0 0
    %1190 = vmatpush1.bf16.xpose.msra.mxu0 0
    %1191 = vmatprep.subr.bf16.mxu0 0
    %1192 = vmatpush1.bf16.xpose.msra.mxu0 0
    %1193 = vmatprep.mubr.bf16.mxu0 0
    %1194 = vmatmul.mubr.bf16.gmra.mrb[0].mxu0 %v1156
    %v1195 = vpop.f32.mrb[0].mxu0
    %v1196 = vadd.f32 0.0, %v1195
    %v1197 = vpop.f32.mrb[0].mxu0
    %v1198 = vpop.f32.mrb[0].mxu0
    %v1199 = vpop.f32.mrb[0].mxu0
    %1200 = vdwg.mxu0
    %1201 = vrot.lane.b32.xlu0 %v322, 104
    %v1202 = vpop.permute.xlu0 %1201
    %1203 = vrot.lane.b32.xlu0 %v324, 104
    %v1204 = vpop.permute.xlu0 %1203
    %v1206 = vsel %vm332, %v1202, 0
    %v1209 = vsel %vm332, %v1204, 0
    %1211 = vmatprep.subr.bf16.mxu0 0
    %1212 = vmatpush1.bf16.xpose.msra.mxu0 %v1209
    %1213 = vmatprep.subr.bf16.mxu0 0
    %1214 = vmatpush1.bf16.xpose.msra.mxu0 0
    %1215 = vmatprep.subr.bf16.mxu0 0
    %1216 = vmatpush1.bf16.xpose.msra.mxu0 0
    %1217 = vmatprep.subr.bf16.mxu0 0
    %1218 = vmatpush1.bf16.xpose.msra.mxu0 0
    %1219 = vmatprep.subr.bf16.mxu0 0
    %1220 = vmatpush1.bf16.xpose.msra.mxu0 0
    %1221 = vmatprep.subr.bf16.mxu0 0
    %1222 = vmatpush1.bf16.xpose.msra.mxu0 0
    %1223 = vmatprep.subr.bf16.mxu0 0
    %1224 = vmatpush1.bf16.xpose.msra.mxu0 0
    %1225 = vmatprep.subr.bf16.mxu0 0
    %1226 = vmatpush1.bf16.xpose.msra.mxu0 0
    %1227 = vmatprep.subr.bf16.mxu0 0
    %1228 = vmatpush1.bf16.xpose.msra.mxu0 0
    %1229 = vmatprep.subr.bf16.mxu0 0
    %1230 = vmatpush1.bf16.xpose.msra.mxu0 0
    %1231 = vmatprep.subr.bf16.mxu0 0
    %1232 = vmatpush1.bf16.xpose.msra.mxu0 0
    %1233 = vmatprep.subr.bf16.mxu0 0
    %1234 = vmatpush1.bf16.xpose.msra.mxu0 0
    %1235 = vmatprep.subr.bf16.mxu0 0
    %1236 = vmatpush1.bf16.xpose.msra.mxu0 0
    %1237 = vmatprep.subr.bf16.mxu0 0
    %1238 = vmatpush1.bf16.xpose.msra.mxu0 0
    %1239 = vmatprep.subr.bf16.mxu0 0
    %1240 = vmatpush1.bf16.xpose.msra.mxu0 0
    %1241 = vmatprep.subr.bf16.mxu0 0
    %1242 = vmatpush1.bf16.xpose.msra.mxu0 0
    %1243 = vmatprep.mubr.bf16.mxu0 0
    %1244 = vmatmul.mubr.bf16.gmra.mrb[0].mxu0 %v1206
    %v1245 = vpop.f32.mrb[0].mxu0
    %v1246 = vadd.f32 0.0, %v1245
    %v1247 = vpop.f32.mrb[0].mxu0
    %v1248 = vpop.f32.mrb[0].mxu0
    %v1249 = vpop.f32.mrb[0].mxu0
    %1250 = vdwg.mxu0
    %v1251 = vmul.f32 %v1196, 0.35355338
    %v1252 = vmul.f32 %v1246, 0.35355338
    %v1253 = vsel %vm428, %v1251, -1e+30
    %v1254 = vsel %vm428, %v1252, -1e+30
    %v1255 = vsel %vm332, %v1253, -inf
    %1256 = vmax.xlane.f32.xlu0 %v1255
    %v1257 = vpop.xlane.xlu0 %1256
    %v1258 = vsel %vm332, %v1254, -inf
    %1259 = vmax.xlane.f32.xlu0 %v1258
    %v1260 = vpop.xlane.xlu0 %1259
    %v1261 = vsub.f32 %v1253, %v1257
    %v1262 = vsub.f32 %v1254, %v1260
    %v1263 = vmul.f32 %v1261, 1.442695
    %v1264 = vpow.pop %v1263
    %v1265 = vmul.f32 %v1262, 1.442695
    %v1266 = vpow.pop %v1265
    %v1267 = vsel %vm332, %v1264, 0.0
    %1268 = vadd.xlane.f32.xlu0 %v1267
    %v1269 = vpop.xlane.xlu0 %1268
    %v1270 = vsel %vm332, %v1266, 0.0
    %1271 = vadd.xlane.f32.xlu0 %v1270
    %v1272 = vpop.xlane.xlu0 %1271
    %v1273 = vrcp.pop %v1269
    %v1274 = vrcp.pop %v1272
    %v1275 = vmul.f32 %v1264, %v1273
    %v1276 = vmul.f32 %v1266, %v1274
    %v1277 = vpack.c.bf16 %v1275, %v1275
    %v1278 = vpack.c.bf16 %v1276, %v1276
    %1279 = vrot.lane.b32.xlu0 %v325, 104
    %v1280 = vpop.permute.xlu0 %1279
    %v1282 = vsel %vm332, %v1277, 0
    %v1285 = vsel %vm458, %v1280, 0
    %1287 = vmatprep.subr.bf16.mxu0 0
    %1288 = vmatpush1.bf16.msra.mxu0 %v1285
    %1289 = vmatprep.subr.bf16.mxu0 0
    %1290 = vmatpush1.bf16.msra.mxu0 0
    %1291 = vmatprep.subr.bf16.mxu0 0
    %1292 = vmatpush1.bf16.msra.mxu0 0
    %1293 = vmatprep.subr.bf16.mxu0 0
    %1294 = vmatpush1.bf16.msra.mxu0 0
    %1295 = vmatprep.subr.bf16.mxu0 0
    %1296 = vmatpush1.bf16.msra.mxu0 0
    %1297 = vmatprep.subr.bf16.mxu0 0
    %1298 = vmatpush1.bf16.msra.mxu0 0
    %1299 = vmatprep.subr.bf16.mxu0 0
    %1300 = vmatpush1.bf16.msra.mxu0 0
    %1301 = vmatprep.subr.bf16.mxu0 0
    %1302 = vmatpush1.bf16.msra.mxu0 0
    %1303 = vmatprep.subr.bf16.mxu0 0
    %1304 = vmatpush1.bf16.msra.mxu0 0
    %1305 = vmatprep.subr.bf16.mxu0 0
    %1306 = vmatpush1.bf16.msra.mxu0 0
    %1307 = vmatprep.subr.bf16.mxu0 0
    %1308 = vmatpush1.bf16.msra.mxu0 0
    %1309 = vmatprep.subr.bf16.mxu0 0
    %1310 = vmatpush1.bf16.msra.mxu0 0
    %1311 = vmatprep.subr.bf16.mxu0 0
    %1312 = vmatpush1.bf16.msra.mxu0 0
    %1313 = vmatprep.subr.bf16.mxu0 0
    %1314 = vmatpush1.bf16.msra.mxu0 0
    %1315 = vmatprep.subr.bf16.mxu0 0
    %1316 = vmatpush1.bf16.msra.mxu0 0
    %1317 = vmatprep.subr.bf16.mxu0 0
    %1318 = vmatpush1.bf16.msra.mxu0 0
    %1319 = vmatprep.mubr.bf16.mxu0 0
    %1320 = vmatmul.mubr.bf16.gmra.mrb[0].mxu0 %v1282
    %v1321 = vpop.f32.mrb[0].mxu0
    %v1322 = vadd.f32 0.0, %v1321
    %v1323 = vpop.f32.mrb[0].mxu0
    %v1324 = vpop.f32.mrb[0].mxu0
    %v1325 = vpop.f32.mrb[0].mxu0
    %1326 = vdwg.mxu0
    %1327 = vrot.lane.b32.xlu0 %v326, 104
    %v1328 = vpop.permute.xlu0 %1327
    %v1330 = vsel %vm332, %v1278, 0
    %v1333 = vsel %vm458, %v1328, 0
    %1335 = vmatprep.subr.bf16.mxu0 0
    %1336 = vmatpush1.bf16.msra.mxu0 %v1333
    %1337 = vmatprep.subr.bf16.mxu0 0
    %1338 = vmatpush1.bf16.msra.mxu0 0
    %1339 = vmatprep.subr.bf16.mxu0 0
    %1340 = vmatpush1.bf16.msra.mxu0 0
    %1341 = vmatprep.subr.bf16.mxu0 0
    %1342 = vmatpush1.bf16.msra.mxu0 0
    %1343 = vmatprep.subr.bf16.mxu0 0
    %1344 = vmatpush1.bf16.msra.mxu0 0
    %1345 = vmatprep.subr.bf16.mxu0 0
    %1346 = vmatpush1.bf16.msra.mxu0 0
    %1347 = vmatprep.subr.bf16.mxu0 0
    %1348 = vmatpush1.bf16.msra.mxu0 0
    %1349 = vmatprep.subr.bf16.mxu0 0
    %1350 = vmatpush1.bf16.msra.mxu0 0
    %1351 = vmatprep.subr.bf16.mxu0 0
    %1352 = vmatpush1.bf16.msra.mxu0 0
    %1353 = vmatprep.subr.bf16.mxu0 0
    %1354 = vmatpush1.bf16.msra.mxu0 0
    %1355 = vmatprep.subr.bf16.mxu0 0
    %1356 = vmatpush1.bf16.msra.mxu0 0
    %1357 = vmatprep.subr.bf16.mxu0 0
    %1358 = vmatpush1.bf16.msra.mxu0 0
    %1359 = vmatprep.subr.bf16.mxu0 0
    %1360 = vmatpush1.bf16.msra.mxu0 0
    %1361 = vmatprep.subr.bf16.mxu0 0
    %1362 = vmatpush1.bf16.msra.mxu0 0
    %1363 = vmatprep.subr.bf16.mxu0 0
    %1364 = vmatpush1.bf16.msra.mxu0 0
    %1365 = vmatprep.subr.bf16.mxu0 0
    %1366 = vmatpush1.bf16.msra.mxu0 0
    %1367 = vmatprep.mubr.bf16.mxu0 0
    %1368 = vmatmul.mubr.bf16.gmra.mrb[0].mxu0 %v1330
    %v1369 = vpop.f32.mrb[0].mxu0
    %v1370 = vadd.f32 0.0, %v1369
    %v1371 = vpop.f32.mrb[0].mxu0
    %v1372 = vpop.f32.mrb[0].mxu0
    %v1373 = vpop.f32.mrb[0].mxu0
    %1374 = vdwg.mxu0
    %v1375 = vpack.c.bf16 %v1370, %v1322
    %v1376 = vld [vmem:[%s6 + $0xc] sm:$0xf]
    %v1378 = vsel %vm332, %v1375, 0
    %v1381 = vsel %vm458, %v1376, 0
    %1383 = vmatprep.subr.bf16.mxu0 0
    %1384 = vmatpush1.bf16.msra.mxu0 %v1381
    %1385 = vmatprep.subr.bf16.mxu0 0
    %1386 = vmatpush1.bf16.msra.mxu0 0
    %1387 = vmatprep.subr.bf16.mxu0 0
    %1388 = vmatpush1.bf16.msra.mxu0 0
    %1389 = vmatprep.subr.bf16.mxu0 0
    %1390 = vmatpush1.bf16.msra.mxu0 0
    %1391 = vmatprep.subr.bf16.mxu0 0
    %1392 = vmatpush1.bf16.msra.mxu0 0
    %1393 = vmatprep.subr.bf16.mxu0 0
    %1394 = vmatpush1.bf16.msra.mxu0 0
    %1395 = vmatprep.subr.bf16.mxu0 0
    %1396 = vmatpush1.bf16.msra.mxu0 0
    %1397 = vmatprep.subr.bf16.mxu0 0
    %1398 = vmatpush1.bf16.msra.mxu0 0
    %1399 = vmatprep.subr.bf16.mxu0 0
    %1400 = vmatpush1.bf16.msra.mxu0 0
    %1401 = vmatprep.subr.bf16.mxu0 0
    %1402 = vmatpush1.bf16.msra.mxu0 0
    %1403 = vmatprep.subr.bf16.mxu0 0
    %1404 = vmatpush1.bf16.msra.mxu0 0
    %1405 = vmatprep.subr.bf16.mxu0 0
    %1406 = vmatpush1.bf16.msra.mxu0 0
    %1407 = vmatprep.subr.bf16.mxu0 0
    %1408 = vmatpush1.bf16.msra.mxu0 0
    %1409 = vmatprep.subr.bf16.mxu0 0
    %1410 = vmatpush1.bf16.msra.mxu0 0
    %1411 = vmatprep.subr.bf16.mxu0 0
    %1412 = vmatpush1.bf16.msra.mxu0 0
    %1413 = vmatprep.subr.bf16.mxu0 0
    %1414 = vmatpush1.bf16.msra.mxu0 0
    %1415 = vmatprep.mubr.bf16.mxu0 0
    %1416 = vmatmul.mubr.bf16.gmra.mrb[0].mxu0 %v1378
    %v1417 = vpop.f32.mrb[0].mxu0
    %v1418 = vadd.f32 0.0, %v1417
    %v1419 = vpop.f32.mrb[0].mxu0
    %v1420 = vpop.f32.mrb[0].mxu0
    %v1421 = vadd.f32 0.0, %v1420
    %v1422 = vpop.f32.mrb[0].mxu0
    %1423 = vdwg.mxu0
    %v1424 = vadd.f32 %v1149, %v1418
    %v1425 = vadd.f32 %v1150, %v1421
    %v1426 = vld [vmem:[#allocation2] sm:$0x1]
    %v1428 = vlaneseq
    %v1429 = vshrl.u32 %v1428, 7
    %v1430 = vsub.s32 0, %v1429
    %v1431 = vrot.slane %v1426, %v1430
    %v1433 = vadd.f32 %v1424, %v1431
    %v1434 = vadd.f32 %v1425, %v1431
    %v1435 = vadd.f32 %v1433, %v144
    %v1436 = vadd.f32 %v1434, %v145
    %v1437 = vld [vmem:[#allocation5] sm:$0x1]
    %v1438 = vld [vmem:[#allocation7] sm:$0x1]
    %v1439 = vsel %vm88, %v1435, 0.0
    %1440 = vadd.xlane.f32.xlu0 %v1439
    %v1441 = vpop.xlane.xlu0 %1440
    %v1442 = vsel %vm88, %v1436, 0.0
    %1443 = vadd.xlane.f32.xlu0 %v1442
    %v1444 = vpop.xlane.xlu0 %1443
    %v1445 = vmul.f32 %v1441, %v95
    %v1446 = vmul.f32 %v1444, %v95
    %v1447 = vsub.f32 %v1435, %v1445
    %v1448 = vsub.f32 %v1436, %v1446
    %v1449 = vmul.f32 %v1447, %v1447
    %v1450 = vmul.f32 %v1448, %v1448
    %v1451 = vsel %vm88, %v1449, 0.0
    %1452 = vadd.xlane.f32.xlu0 %v1451
    %v1453 = vpop.xlane.xlu0 %1452
    %v1454 = vsel %vm88, %v1450, 0.0
    %1455 = vadd.xlane.f32.xlu0 %v1454
    %v1456 = vpop.xlane.xlu0 %1455
    %v1457 = vmul.f32 %v1453, 0.032258064
    %v1458 = vmul.f32 %v1456, 0.032258064
    %v1459 = vrsqrt.pop %v1457
    %v1460 = vmul.f32 %v1457, %v1459
    %vm1461 = vcmp.eq.f32.partialorder %v1457, inf
    %v1462 = vsel %vm1461, %v1457, %v1460
    %vm1463 = vcmp.eq.f32.partialorder %v1457, 0.0
    %v1464 = vand.u32 %v1457, 2147483648
    %v1465 = vsel %vm1463, %v1464, %v1462
    %v1466 = vrsqrt.pop %v1458
    %v1467 = vmul.f32 %v1458, %v1466
    %vm1468 = vcmp.eq.f32.partialorder %v1458, inf
    %v1469 = vsel %vm1468, %v1458, %v1467
    %vm1470 = vcmp.eq.f32.partialorder %v1458, 0.0
    %v1471 = vand.u32 %v1458, 2147483648
    %v1472 = vsel %vm1470, %v1471, %v1469
    %v1473 = vadd.f32 %v1465, 1e-06
    %v1474 = vadd.f32 %v1472, 1e-06
    %v1475 = vrcp.pop %v1473
    %v1476 = vrcp.pop %v1474
    %v1477 = vmul.f32 %v1447, %v1475
    %v1478 = vmul.f32 %v1448, %v1476
    %v1480 = vlaneseq
    %v1481 = vshrl.u32 %v1480, 7
    %v1482 = vsub.s32 0, %v1481
    %v1483 = vrot.slane %v1437, %v1482
    %v1485 = vmul.f32 %v1483, %v1477
    %v1486 = vmul.f32 %v1483, %v1478
    %v1488 = vlaneseq
    %v1489 = vshrl.u32 %v1488, 7
    %v1490 = vsub.s32 0, %v1489
    %v1491 = vrot.slane %v1438, %v1490
    %v1493 = vadd.f32 %v1485, %v1491
    %v1494 = vadd.f32 %v1486, %v1491
    %v1495 = vpack.c.bf16 %v1494, %v1493
    %v1496 = vld [vmem:[%s10] sm:$0xf]
    %v1497 = vld [vmem:[%s10 + $0x4] sm:$0xf]
    %v1498 = vld [vmem:[%s10 + $0x8] sm:$0xf]
    %v1499 = vld [vmem:[%s10 + $0xc] sm:$0xf]
    %v1500 = vld [vmem:[%s11] sm:$0x1]
    %v1502 = vlaneseq
    %v1503 = vshrl.u32 %v1502, 7
    %v1504 = vsub.s32 0, %v1503
    %v1505 = vrot.slane %v1500, %v1504
    %v1511 = vunpack.c.l.b16 %v1496
    %v1512 = vunpack.c.l.b16 %v1497
    %v1513 = vunpack.c.l.b16 %v1498
    %v1514 = vunpack.c.l.b16 %v1499
    %v1515 = vpack.c.b16 %v1512, %v1511
    %v1516 = vpack.c.b16 %v1514, %v1513
    %v1520 = vsel %vm88, %v1495, 0
    %1522 = vmatprep.subr.bf16.mxu0 0
    %1523 = vmatpush1.bf16.msra.mxu0 %v1515
    %1524 = vmatprep.subr.bf16.mxu0 0
    %1525 = vmatpush1.bf16.msra.mxu0 %v1516
    %1526 = vmatprep.subr.bf16.mxu0 0
    %1527 = vmatpush1.bf16.msra.mxu0 0
    %1528 = vmatprep.subr.bf16.mxu0 0
    %1529 = vmatpush1.bf16.msra.mxu0 0
    %1530 = vmatprep.subr.bf16.mxu0 0
    %1531 = vmatpush1.bf16.msra.mxu0 0
    %1532 = vmatprep.subr.bf16.mxu0 0
    %1533 = vmatpush1.bf16.msra.mxu0 0
    %1534 = vmatprep.subr.bf16.mxu0 0
    %1535 = vmatpush1.bf16.msra.mxu0 0
    %1536 = vmatprep.subr.bf16.mxu0 0
    %1537 = vmatpush1.bf16.msra.mxu0 0
    %1538 = vmatprep.subr.bf16.mxu0 0
    %1539 = vmatpush1.bf16.msra.mxu0 0
    %1540 = vmatprep.subr.bf16.mxu0 0
    %1541 = vmatpush1.bf16.msra.mxu0 0
    %1542 = vmatprep.subr.bf16.mxu0 0
    %1543 = vmatpush1.bf16.msra.mxu0 0
    %1544 = vmatprep.subr.bf16.mxu0 0
    %1545 = vmatpush1.bf16.msra.mxu0 0
    %1546 = vmatprep.subr.bf16.mxu0 0
    %1547 = vmatpush1.bf16.msra.mxu0 0
    %1548 = vmatprep.subr.bf16.mxu0 0
    %1549 = vmatpush1.bf16.msra.mxu0 0
    %1550 = vmatprep.subr.bf16.mxu0 0
    %1551 = vmatpush1.bf16.msra.mxu0 0
    %1552 = vmatprep.subr.bf16.mxu0 0
    %1553 = vmatpush1.bf16.msra.mxu0 0
    %1554 = vmatprep.mubr.bf16.mxu0 0
    %1555 = vmatmul.mubr.bf16.gmra.mrb[0].mxu0 %v1520
    %v1556 = vpop.f32.mrb[0].mxu0
    %v1557 = vadd.f32 %v1505, %v1556
    %v1558 = vpop.f32.mrb[0].mxu0
    %v1559 = vpop.f32.mrb[0].mxu0
    %v1560 = vadd.f32 %v1505, %v1559
    %v1561 = vpop.f32.mrb[0].mxu0
    %1562 = vdwg.mxu0
    %v1563 = vmax.f32 %v1557, 0.0
    %v1564 = vmax.f32 %v1560, 0.0
    %v1565 = vpack.c.bf16 %v1564, %v1563
    %v1566 = vld [vmem:[%s12] sm:$0xf]
    %v1567 = vld [vmem:[%s12 + $0x4] sm:$0xf]
    %v1568 = vld [vmem:[%s12 + $0x8] sm:$0xf]
    %v1569 = vld [vmem:[%s12 + $0xc] sm:$0xf]
    %v1570 = vld [vmem:[%s12 + $0x10] sm:$0xf]
    %v1571 = vld [vmem:[%s12 + $0x14] sm:$0xf]
    %v1572 = vld [vmem:[%s12 + $0x18] sm:$0xf]
    %v1573 = vld [vmem:[%s12 + $0x1c] sm:$0xf]
    %v1574 = vld [vmem:[%s12 + $0x20] sm:$0xf]
    %v1575 = vld [vmem:[%s12 + $0x24] sm:$0xf]
    %v1576 = vld [vmem:[%s12 + $0x28] sm:$0xf]
    %v1577 = vld [vmem:[%s12 + $0x2c] sm:$0xf]
    %v1578 = vld [vmem:[%s12 + $0x30] sm:$0xf]
    %v1579 = vld [vmem:[%s12 + $0x34] sm:$0xf]
    %v1580 = vld [vmem:[%s12 + $0x38] sm:$0xf]
    %v1581 = vld [vmem:[%s12 + $0x3c] sm:$0xf]
    %v1582 = vld [vmem:[%s13] sm:$0x1]
    %v1584 = vlaneseq
    %v1585 = vshrl.u32 %v1584, 7
    %v1586 = vsub.s32 0, %v1585
    %v1587 = vrot.slane %v1582, %v1586
    %v1605 = vunpack.c.l.b16 %v1566
    %v1606 = vunpack.c.l.b16 %v1567
    %v1607 = vunpack.c.l.b16 %v1568
    %v1608 = vunpack.c.l.b16 %v1569
    %v1609 = vunpack.c.l.b16 %v1570
    %v1610 = vunpack.c.l.b16 %v1571
    %v1611 = vunpack.c.l.b16 %v1572
    %v1612 = vunpack.c.l.b16 %v1573
    %v1613 = vunpack.c.l.b16 %v1574
    %v1614 = vunpack.c.l.b16 %v1575
    %v1615 = vunpack.c.l.b16 %v1576
    %v1616 = vunpack.c.l.b16 %v1577
    %v1617 = vunpack.c.l.b16 %v1578
    %v1618 = vunpack.c.l.b16 %v1579
    %v1619 = vunpack.c.l.b16 %v1580
    %v1620 = vunpack.c.l.b16 %v1581
    %v1621 = vpack.c.b16 %v1606, %v1605
    %v1622 = vpack.c.b16 %v1608, %v1607
    %v1623 = vpack.c.b16 %v1610, %v1609
    %v1624 = vpack.c.b16 %v1612, %v1611
    %v1625 = vpack.c.b16 %v1614, %v1613
    %v1626 = vpack.c.b16 %v1616, %v1615
    %v1627 = vpack.c.b16 %v1618, %v1617
    %v1628 = vpack.c.b16 %v1620, %v1619
    %1637 = vmatprep.subr.bf16.mxu0 0
    %1638 = vmatpush1.bf16.msra.mxu0 %v1621
    %1639 = vmatprep.subr.bf16.mxu0 0
    %1640 = vmatpush1.bf16.msra.mxu0 %v1622
    %1641 = vmatprep.subr.bf16.mxu0 0
    %1642 = vmatpush1.bf16.msra.mxu0 %v1623
    %1643 = vmatprep.subr.bf16.mxu0 0
    %1644 = vmatpush1.bf16.msra.mxu0 %v1624
    %1645 = vmatprep.subr.bf16.mxu0 0
    %1646 = vmatpush1.bf16.msra.mxu0 %v1625
    %1647 = vmatprep.subr.bf16.mxu0 0
    %1648 = vmatpush1.bf16.msra.mxu0 %v1626
    %1649 = vmatprep.subr.bf16.mxu0 0
    %1650 = vmatpush1.bf16.msra.mxu0 %v1627
    %1651 = vmatprep.subr.bf16.mxu0 0
    %1652 = vmatpush1.bf16.msra.mxu0 %v1628
    %1653 = vmatprep.subr.bf16.mxu0 0
    %1654 = vmatpush1.bf16.msra.mxu0 0
    %1655 = vmatprep.subr.bf16.mxu0 0
    %1656 = vmatpush1.bf16.msra.mxu0 0
    %1657 = vmatprep.subr.bf16.mxu0 0
    %1658 = vmatpush1.bf16.msra.mxu0 0
    %1659 = vmatprep.subr.bf16.mxu0 0
    %1660 = vmatpush1.bf16.msra.mxu0 0
    %1661 = vmatprep.subr.bf16.mxu0 0
    %1662 = vmatpush1.bf16.msra.mxu0 0
    %1663 = vmatprep.subr.bf16.mxu0 0
    %1664 = vmatpush1.bf16.msra.mxu0 0
    %1665 = vmatprep.subr.bf16.mxu0 0
    %1666 = vmatpush1.bf16.msra.mxu0 0
    %1667 = vmatprep.subr.bf16.mxu0 0
    %1668 = vmatpush1.bf16.msra.mxu0 0
    %1669 = vmatprep.mubr.bf16.mxu0 0
    %1670 = vmatmul.mubr.bf16.gmra.mrb[0].mxu0 %v1565
    %v1671 = vpop.f32.mrb[0].mxu0
    %v1672 = vadd.f32 %v1587, %v1671
    %v1673 = vpop.f32.mrb[0].mxu0
    %v1674 = vpop.f32.mrb[0].mxu0
    %v1675 = vadd.f32 %v1587, %v1674
    %v1676 = vpop.f32.mrb[0].mxu0
    %1677 = vdwg.mxu0
    %v1678 = vadd.f32 %v1672, %v1493
    %v1679 = vadd.f32 %v1675, %v1494
    %1680 = vst.msk [vmem:[#allocation8] sm:$0xff] %vm88, %v1678
    %1681 = vst.msk [vmem:[#allocation8 + $0x8] sm:$0xff] %vm88, %v1679
    // Predicated region
    $region70: #{tpu_custom_call.1} parent=1 // pred_check
      _
    $region71: #{tpu_custom_call.1} parent=1 // pred_check_branch
      %1683 = sbr.rel (0) target = $region73
    $region72: #{tpu_custom_call.1} parent=1 // pred_region
      %s1685 = ssub.s32 256, 256
      %1686 = vsyncadd [#allocation4], %s1685
      %s1687 = sshll.u32 [#allocation8], 4
      %s1688 = int_to_ptr.vmem [resolvable:$true] %s1687
      %1693 = dma.vmem_to_hbm [thread:$0]  %s1688, 256, %s14, [#allocation4], 128, 128, 8
    $region73: #{tpu_custom_call.1} parent=1 // pred_fallthru
      _
    // Predicated region
    $region74: #{tpu_custom_call.1} parent=1 // pred_check
      _
    $region75: #{tpu_custom_call.1} parent=1 // pred_check_branch
      %1695 = sbr.rel (0) target = $region77
    $region76: #{tpu_custom_call.1} parent=1 // pred_region
      %1696 = dma.done [#allocation4], 256
    $region77: #{tpu_custom_call.1} parent=1 // pred_fallthru
      _
    %1697 = vsyncpa [#allocation3], 1
    %1698 = vsyncpa [#allocation6], 1
    %1699 = vsyncpa [#allocation4], 1

</llo_original>
